<compile_context>
chip_gen: v7x
topology: tpu7x:2x2x1
jax: 0.10.0
libtpu: 0.0.40
codegen_flags: <defaults>
</compile_context>

<pallas_src>
import jax
import jax.numpy as jnp
from jax.experimental import pallas as pl
from jax.experimental.pallas import tpu as pltpu

IN_DIM = 512
OUT_DIM = 768


# --------------------------------------------------------------------------- kernels
def mlp_mapper_resident_kernel(x_ref, w1_ref, b1_ref, w2_ref, b2_ref, o_ref):
    # bf16 operands on the MXU, f32 accumulation; bias/ReLU in f32 (reference does x.float()).
    h = jnp.dot(x_ref[...], w1_ref[...], preferred_element_type=jnp.float32)
    h = jnp.maximum(h + b1_ref[...], 0.0)
    out = jnp.dot(h.astype(jnp.bfloat16), w2_ref[...], preferred_element_type=jnp.float32)
    o_ref[...] = (out + b2_ref[...]).astype(o_ref.dtype)


def mlp_mapper_acc_kernel(x_ref, w1_ref, b1_ref, w2_ref, b2_ref, o_ref, acc_ref):
    # Hidden dim is tiled along grid axis 1 ("arbitrary"); accumulate partial outputs in f32.
    j = pl.program_id(1)

    @pl.when(j == 0)
    def _():
        acc_ref[...] = jnp.zeros_like(acc_ref)

    h = jnp.dot(x_ref[...], w1_ref[...], preferred_element_type=jnp.float32)
    h = jnp.maximum(h + b1_ref[...], 0.0)   # b1 chunk matches this hidden slice
    acc_ref[...] += jnp.dot(h.astype(jnp.bfloat16), w2_ref[...],
                            preferred_element_type=jnp.float32)

    @pl.when(j == pl.num_programs(1) - 1)
    def _():
        o_ref[...] = (acc_ref[...] + b2_ref[...]).astype(o_ref.dtype)


# --------------------------------------------------------------------------- sizing
def _round_up(x, m):
    return (x + m - 1) // m * m


def _tpu_caps():
    """(per-TensorCore VMEM bytes, #TensorCores per chip) — defensive, generation-aware."""
    vmem = 128 << 20
    n_tc = 1
    try:
        info = pltpu.get_tpu_info()
        vmem = int(getattr(info, "vmem_capacity_bytes", vmem)) or vmem
    except Exception:
        pass
    try:
        dk = jax.devices()[0].device_kind.lower()
        if "v7" in dk or "tpu7" in dk:
            n_tc = 2
            vmem = min(vmem, 64 << 20)   # v7x: 64 MiB per TensorCore
    except Exception:
        pass
    return vmem, n_tc


def _choose_tiles(B, dim, vmem, n_tc):
    """Pick (tm, td). td == dim -> weights fully resident (path A); td < dim -> hidden dim
    tiled with an accumulator (path B)."""
    budget = int(vmem * 0.70)                        # ~45 MiB v7x, ~90 MiB v5e/v6e
    per_row = 2 * IN_DIM * 2 + 2 * OUT_DIM * 4       # dbuf bf16 x + dbuf f32 out
    min_rows = 256                                   # keep the MXU M dim healthy

    w_full = IN_DIM * dim * 2 + dim * OUT_DIM * 2 + (dim + OUT_DIM) * 4
    if w_full + min_rows * per_row <= budget:
        td, w_bytes, acc_per_row = dim, w_full, 0
    else:
        acc_per_row = OUT_DIM * 4                             # f32 accumulator scratch
        per_hidden = 2 * ((IN_DIM + OUT_DIM) * 2 + 4)         # dbuf bf16 W1 col + W2 row + f32 b1
        avail = budget - min_rows * (per_row + acc_per_row)
        td = min(avail // per_hidden, dim, 4096)
        td = max(128, (td // 128) * 128)                      # lane-aligned hidden chunks
        w_bytes = td * per_hidden

    cap = 1024 if vmem >= (100 << 20) else 512        # bigger tiles on 128 MiB v5e/v6e VMEM
    rows = (budget - w_bytes) // (per_row + acc_per_row if acc_per_row else per_row)
    tm = int(max(16, min(cap, (rows // 16) * 16)))    # multiple of 16 for bf16 sublane packing

    if B <= tm:
        if n_tc >= 2 and B >= 256:
            # Shard across TensorCores only when each core still gets >=2 pipelined tiles of
            # useful size; otherwise the duplicated per-core weight DMA isn't worth it.
            tm = max(16, _round_up(pl.cdiv(B, 2 * n_tc), 16))
        else:
            tm = max(16, _round_up(B, 16))            # single tile on single-TC v5e/v6e
    return tm, td


# --------------------------------------------------------------------------- wrapper
def mlp_mapper(x, w1, b1, w2, b2, *, tm=None, td=None, out_dtype=jnp.float32):
    """x: (B, 512); w1: (512, dim); b1: (dim,) or (1, dim); w2: (dim, 768); b2: (768,) or (1, 768)."""
    B, in_dim = x.shape
    assert in_dim == IN_DIM, f"expected x (..., {IN_DIM}), got {x.shape}"
    dim = w1.shape[1]

    vmem, n_tc = _tpu_caps()
    tm_auto, td_auto = _choose_tiles(B, dim, vmem, n_tc)
    tm = int(tm if tm is not None else tm_auto)
    td = int(td if td is not None else td_auto)
    td = min(td, dim)
    if td < dim:
        td = max(128, (td // 128) * 128)              # W1 block last dim must be lane-aligned
    if td >= dim:
        td = dim

    # bf16 activation / weight streams for the MXU; f32 biases, f32 accumulation in-kernel.
    x = x.astype(jnp.bfloat16)
    w1 = w1.astype(jnp.bfloat16)
    w2 = w2.astype(jnp.bfloat16)
    b1 = b1.reshape(1, dim).astype(jnp.float32)
    b2 = b2.reshape(1, OUT_DIM).astype(jnp.float32)

    # Pad the batch to a tile multiple; slice the result back afterwards.
    B_pad = _round_up(B, tm)
    if B_pad != B:
        x = jnp.pad(x, ((0, B_pad - B), (0, 0)))

    out_itemsize = jnp.dtype(out_dtype).itemsize
    cost = pl.CostEstimate(
        flops=2 * B_pad * IN_DIM * dim + 2 * B_pad * dim * OUT_DIM,
        transcendentals=0,
        bytes_accessed=(B_pad * IN_DIM * 2 + IN_DIM * dim * 2 + dim * OUT_DIM * 2
                        + (dim + OUT_DIM) * 4 + B_pad * OUT_DIM * out_itemsize),
    )

    if td == dim:
        # ---------------- Path A: weights fully resident in VMEM, 1-D batch grid ----------------
        w_vmem = IN_DIM * dim * 2 + dim * OUT_DIM * 2 + (dim + OUT_DIM) * 4
        need = 2 * tm * IN_DIM * 2 + 2 * tm * OUT_DIM * out_itemsize + w_vmem
        vmem_limit = int(min(vmem - (8 << 20), max(need + (4 << 20), 32 << 20)))
        resident = pl.Buffered(1)  # constant index_map -> single-buffer the resident weights
        out = pl.pallas_call(
            mlp_mapper_resident_kernel,
            out_shape=jax.ShapeDtypeStruct((B_pad, OUT_DIM), out_dtype),
            grid_spec=pltpu.PrefetchScalarGridSpec(
                num_scalar_prefetch=0,
                grid=(B_pad // tm,),
                in_specs=[
                    pl.BlockSpec((tm, IN_DIM), lambda i: (i, 0)),                            # x tile
                    pl.BlockSpec((IN_DIM, dim), lambda i: (0, 0), pipeline_mode=resident),   # W1
                    pl.BlockSpec((1, dim), lambda i: (0, 0), pipeline_mode=resident),        # b1
                    pl.BlockSpec((dim, OUT_DIM), lambda i: (0, 0), pipeline_mode=resident),  # W2
                    pl.BlockSpec((1, OUT_DIM), lambda i: (0, 0), pipeline_mode=resident),    # b2
                ],
                out_specs=pl.BlockSpec((tm, OUT_DIM), lambda i: (i, 0)),
            ),
            compiler_params=pltpu.CompilerParams(
                dimension_semantics=("parallel",),
                vmem_limit_bytes=vmem_limit,
            ),
            cost_estimate=cost,
        )(x, w1, b1, w2, b2)
    else:
        # ---------------- Path B: hidden dim tiled, f32 accumulator, 2-D grid -------------------
        dim_pad = _round_up(dim, td)
        if dim_pad != dim:
            # Zero-padded hidden units contribute relu(0 + 0) @ W2_pad == 0 to the output.
            w1 = jnp.pad(w1, ((0, 0), (0, dim_pad - dim)))
            b1 = jnp.pad(b1, ((0, 0), (0, dim_pad - dim)))
            w2 = jnp.pad(w2, ((0, dim_pad - dim), (0, 0)))
        w_vmem = 2 * (IN_DIM * td * 2 + td * OUT_DIM * 2 + td * 4) + OUT_DIM * 4
        need = (2 * tm * IN_DIM * 2 + 2 * tm * OUT_DIM * out_itemsize
                + tm * OUT_DIM * 4 + w_vmem)
        vmem_limit = int(min(vmem - (8 << 20), max(need + (4 << 20), 32 << 20)))
        out = pl.pallas_call(
            mlp_mapper_acc_kernel,
            out_shape=jax.ShapeDtypeStruct((B_pad, OUT_DIM), out_dtype),
            grid_spec=pltpu.PrefetchScalarGridSpec(
                num_scalar_prefetch=0,
                grid=(B_pad // tm, dim_pad // td),
                in_specs=[
                    pl.BlockSpec((tm, IN_DIM), lambda i, j: (i, 0)),   # x resident across j
                    pl.BlockSpec((IN_DIM, td), lambda i, j: (0, j)),   # W1 column chunk
                    pl.BlockSpec((1, td), lambda i, j: (0, j)),        # b1 chunk
                    pl.BlockSpec((td, OUT_DIM), lambda i, j: (j, 0)),  # W2 row chunk
                    pl.BlockSpec((1, OUT_DIM), lambda i, j: (0, 0),
                                 pipeline_mode=pl.Buffered(1)),        # b2 resident
                ],
                out_specs=pl.BlockSpec((tm, OUT_DIM), lambda i, j: (i, 0)),
                scratch_shapes=[pltpu.VMEM((tm, OUT_DIM), jnp.float32)],
            ),
            compiler_params=pltpu.CompilerParams(
                dimension_semantics=("parallel", "arbitrary"),
                vmem_limit_bytes=vmem_limit,
            ),
            cost_estimate=cost,
        )(x, w1, b1, w2, b2)

    return out[:B] if B_pad != B else out


# --------------------------------------------------------------------------- params / test
def init_params(key, dim):
    """Deterministic init mimicking nn.Linear default (uniform +-1/sqrt(fan_in)).
    Weights stored pre-transposed as (in, out)."""
    k1, k2, k3, k4 = jax.random.split(key, 4)
    bound1 = 1.0 / jnp.sqrt(jnp.float32(IN_DIM))
    bound2 = 1.0 / jnp.sqrt(jnp.float32(dim))
    w1 = jax.random.uniform(k1, (IN_DIM, dim), jnp.float32, -bound1, bound1)
    b1 = jax.random.uniform(k2, (1, dim), jnp.float32, -bound1, bound1)
    w2 = jax.random.uniform(k3, (dim, OUT_DIM), jnp.float32, -bound2, bound2)
    b2 = jax.random.uniform(k4, (1, OUT_DIM), jnp.float32, -bound2, bound2)
    return w1, b1, w2, b2


if __name__ == "__main__":
    key = jax.random.PRNGKey(0)
    kx, kp = jax.random.split(key)

    dim = 256   # MLP_mapper hidden size
    B = 200     # deliberately NOT a multiple of the tile -> exercises the padding path

    x = jax.random.normal(kx, (B, IN_DIM), jnp.float32)
    w1, b1, w2, b2 = init_params(kp, dim)

    # References: (a) numerically matched bf16-input / f32-accumulate; (b) pure f32 PyTorch semantics.
    xb = x.astype(jnp.bfloat16)
    h = jnp.dot(xb, w1.astype(jnp.bfloat16), preferred_element_type=jnp.float32) + b1
    ref_bf16 = (jnp.dot(jnp.maximum(h, 0.0).astype(jnp.bfloat16), w2.astype(jnp.bfloat16),
                        preferred_element_type=jnp.float32) + b2)
    ref_f32 = jnp.maximum(x @ w1 + b1, 0.0) @ w2 + b2

    # Path A: auto tiling (weights fully resident, 1-D batch grid).
    out = jax.block_until_ready(mlp_mapper(x, w1, b1, w2, b2))
    assert out.shape == (B, OUT_DIM)
    assert jnp.allclose(out, ref_bf16, atol=2e-3, rtol=2e-3)
    assert jnp.allclose(out, ref_f32, atol=5e-2, rtol=5e-2)

    # Path B: forced hidden-dim tiling -> exercises the accumulating 2-D-grid kernel.
    out2 = jax.block_until_ready(mlp_mapper(x, w1, b1, w2, b2, tm=64, td=128))
    assert out2.shape == (B, OUT_DIM)
    assert jnp.allclose(out2, ref_bf16, atol=2e-3, rtol=2e-3)

    print("KERNEL_OK")
</pallas_src>

<mosaic_0001>
module attributes {stable_mosaic.version = 11 : i64} {
  func.func @mlp_mapper_resident_kernel(%arg0: i32, %arg1: memref<208x512xbf16, #tpu.memory_space<vmem>>, %arg2: memref<512x256xbf16, #tpu.memory_space<vmem>>, %arg3: memref<1x256xf32, #tpu.memory_space<vmem>>, %arg4: memref<256x768xbf16, #tpu.memory_space<vmem>>, %arg5: memref<1x768xf32, #tpu.memory_space<vmem>>, %arg6: memref<208x768xf32, #tpu.memory_space<vmem>>) attributes {dimension_semantics = [#tpu.dimension_semantics<parallel>], iteration_bounds = array<i64: 1>, scalar_prefetch = 0 : i64, scratch_operands = 0 : i64, tpu.core_type = #tpu.core_type<tc>, window_params = [{transform_indices = @transform_0, window_bounds = array<i64: 208, 512>}, {pipeline_mode = #tpu.pipeline_mode<synchronous>, transform_indices = @transform_1, window_bounds = array<i64: 512, 256>}, {pipeline_mode = #tpu.pipeline_mode<synchronous>, transform_indices = @transform_2, window_bounds = array<i64: 1, 256>}, {pipeline_mode = #tpu.pipeline_mode<synchronous>, transform_indices = @transform_3, window_bounds = array<i64: 256, 768>}, {pipeline_mode = #tpu.pipeline_mode<synchronous>, transform_indices = @transform_4, window_bounds = array<i64: 1, 768>}, {transform_indices = @transform_5, window_bounds = array<i64: 208, 768>}]} {
    %c0 = arith.constant 0 : index
    %c0_0 = arith.constant 0 : index
    %0 = vector.load %arg1[%c0, %c0_0] : memref<208x512xbf16, #tpu.memory_space<vmem>>, vector<208x512xbf16>
    %c0_1 = arith.constant 0 : index
    %c0_2 = arith.constant 0 : index
    %1 = vector.load %arg2[%c0_1, %c0_2] : memref<512x256xbf16, #tpu.memory_space<vmem>>, vector<512x256xbf16>
    %cst = arith.constant dense<0.000000e+00> : vector<208x256xf32>
    %2 = tpu.matmul %0, %1, %cst {dimension_numbers = #tpu.dot_dimension_numbers<[1], [0], [0], [1], [0, 0, 1, 1], [], []>} : vector<208x512xbf16>, vector<512x256xbf16>, vector<208x256xf32> -> vector<208x256xf32>
    %c0_3 = arith.constant 0 : index
    %c0_4 = arith.constant 0 : index
    %3 = vector.load %arg3[%c0_3, %c0_4] : memref<1x256xf32, #tpu.memory_space<vmem>>, vector<1x256xf32>
    %4 = vector.broadcast %3 : vector<1x256xf32> to vector<208x256xf32>
    %5 = arith.addf %2, %4 : vector<208x256xf32>
    %cst_5 = arith.constant 0.000000e+00 : f32
    %6 = vector.broadcast %cst_5 : f32 to vector<208x256xf32>
    %7 = arith.maximumf %5, %6 : vector<208x256xf32>
    %8 = arith.truncf %7 : vector<208x256xf32> to vector<208x256xbf16>
    %c0_6 = arith.constant 0 : index
    %c0_7 = arith.constant 0 : index
    %9 = vector.load %arg4[%c0_6, %c0_7] : memref<256x768xbf16, #tpu.memory_space<vmem>>, vector<256x768xbf16>
    %cst_8 = arith.constant dense<0.000000e+00> : vector<208x768xf32>
    %10 = tpu.matmul %8, %9, %cst_8 {dimension_numbers = #tpu.dot_dimension_numbers<[1], [0], [0], [1], [0, 0, 1, 1], [], []>} : vector<208x256xbf16>, vector<256x768xbf16>, vector<208x768xf32> -> vector<208x768xf32>
    %c0_9 = arith.constant 0 : index
    %c0_10 = arith.constant 0 : index
    %11 = vector.load %arg5[%c0_9, %c0_10] : memref<1x768xf32, #tpu.memory_space<vmem>>, vector<1x768xf32>
    %12 = vector.broadcast %11 : vector<1x768xf32> to vector<208x768xf32>
    %13 = arith.addf %10, %12 : vector<208x768xf32>
    %c0_11 = arith.constant 0 : index
    %c0_12 = arith.constant 0 : index
    %14 = vector.load %arg6[%c0_11, %c0_12] : memref<208x768xf32, #tpu.memory_space<vmem>>, vector<208x768xf32>
    tpu.vector_store %arg6[%c0_11, %c0_12], %13 {strides = array<i32>} : memref<208x768xf32, #tpu.memory_space<vmem>>, vector<208x768xf32>,
    return
  }
  func.func @transform_0(%arg0: i32) -> (i32, i32) {
    %c0_i32 = arith.constant 0 : i32
    %c0_i32_0 = arith.constant 0 : i32
    return %arg0, %c0_i32 : i32, i32
  }
  func.func @transform_1(%arg0: i32) -> (i32, i32) {
    %c0_i32 = arith.constant 0 : i32
    %c0_i32_0 = arith.constant 0 : i32
    %c0_i32_1 = arith.constant 0 : i32
    return %c0_i32, %c0_i32_0 : i32, i32
  }
  func.func @transform_2(%arg0: i32) -> (i32, i32) {
    %c0_i32 = arith.constant 0 : i32
    %c0_i32_0 = arith.constant 0 : i32
    %c0_i32_1 = arith.constant 0 : i32
    return %c0_i32, %c0_i32_0 : i32, i32
  }
  func.func @transform_3(%arg0: i32) -> (i32, i32) {
    %c0_i32 = arith.constant 0 : i32
    %c0_i32_0 = arith.constant 0 : i32
    %c0_i32_1 = arith.constant 0 : i32
    return %c0_i32, %c0_i32_0 : i32, i32
  }
  func.func @transform_4(%arg0: i32) -> (i32, i32) {
    %c0_i32 = arith.constant 0 : i32
    %c0_i32_0 = arith.constant 0 : i32
    %c0_i32_1 = arith.constant 0 : i32
    return %c0_i32, %c0_i32_0 : i32, i32
  }
  func.func @transform_5(%arg0: i32) -> (i32, i32) {
    %c0_i32 = arith.constant 0 : i32
    %c0_i32_0 = arith.constant 0 : i32
    return %arg0, %c0_i32 : i32, i32
  }
}

</mosaic_0001>

<llo_original>
// kernel: tpu_custom_call.1
$region0: #{tpu_custom_call.1}
  #allocation0 [shape = 'u32[]', space=smem, size = 0x4, offset = 0x4, fixed_abs, tag = 'smem constant byte address 0x4 - core index']
  #allocation1 [shape = 'u32[144,128]{1,0:T(1,128)}', space=vmem, size = 0x12000, scoped, tag = 'internal scratch']
  %s0 = inlined_call_operand.hbm [shape: bf16[208,512], index: 0, kind: input, shape index: {}]
  %s1 = inlined_call_operand.hbm [shape: bf16[512,256], index: 1, kind: input, shape index: {}]
  %s2 = inlined_call_operand.vmem [shape: f32[1,256], index: 2, kind: input, shape index: {}]
  %s3 = inlined_call_operand.hbm [shape: bf16[256,768], index: 3, kind: input, shape index: {}]
  %s4 = inlined_call_operand.vmem [shape: f32[1,768], index: 4, kind: input, shape index: {}]
  %s5 = inlined_call_operand.hbm [shape: f32[208,768], index: 5, kind: output, shape index: {}]
  %s6 = sld [smem:[#allocation0]]
  $region42: #{tpu_custom_call.1} parent=0
    _
  %s8 = ssub.s32 1, %s6
  %s9 = scalar_select 0, %s8, %s6
  $region1: #{tpu_custom_call.1} parent=0
    #allocation2 [shape = 'u8[212992]{0}', space=vmem, size = 0x34000, scoped, tag = 'input window, operand 0, single buffered']
    #allocation3 [shape = 's32[1]{0}', space=sflag, size = 0x4, scoped, tag = 'scoped memory for tpu_custom_call.1']
    #allocation4 [shape = 's32[1]{0}', space=sflag, size = 0x4, scoped, tag = 'scoped memory for tpu_custom_call.1']
    #allocation5 [shape = 'u8[262144]{0}', space=vmem, size = 0x40000, scoped, tag = 'input window, operand 1, single buffered']
    #allocation6 [shape = 's32[1]{0}', space=sflag, size = 0x4, scoped, tag = 'scoped memory for tpu_custom_call.1']
    #allocation7 [shape = 'u8[393216]{0}', space=vmem, size = 0x60000, scoped, tag = 'input window, operand 3, single buffered']
    #allocation8 [shape = 'u8[638976]{0}', space=vmem, size = 0x9c000, scoped, tag = 'output window, operand 0, single buffered']
    %10 = vsyncpa [#allocation3], 0
    %11 = vsyncpa [#allocation6], 0
    %12 = vsyncpa [#allocation4], 0
    // Predicated region
    $region2: #{tpu_custom_call.1} parent=1 // pred_check
      _
    $region3: #{tpu_custom_call.1} parent=1 // pred_check_branch
      %14 = sbr.rel (0) target = $region5
    $region4: #{tpu_custom_call.1} parent=1 // pred_region
      %s16 = ssub.s32 6656, 6656
      %17 = vsyncadd [#allocation3], %s16
      %s18 = sshll.u32 [#allocation2], 4
      %s19 = int_to_ptr.vmem [resolvable:$true] %s18
      %24 = dma.hbm_to_vmem [thread:$0]  %s0, 6656, %s19, [#allocation3], 256, 256, 16
    $region5: #{tpu_custom_call.1} parent=1 // pred_fallthru
      _
    // Predicated region
    $region6: #{tpu_custom_call.1} parent=1 // pred_check
      _
    $region7: #{tpu_custom_call.1} parent=1 // pred_check_branch
      %26 = sbr.rel (0) target = $region9
    $region8: #{tpu_custom_call.1} parent=1 // pred_region
      %s28 = ssub.s32 8192, 8192
      %29 = vsyncadd [#allocation6], %s28
      %s30 = sshll.u32 [#allocation5], 4
      %s31 = int_to_ptr.vmem [resolvable:$true] %s30
      %36 = dma.hbm_to_vmem [thread:$0]  %s1, 8192, %s31, [#allocation6], 128, 128, 8
    $region9: #{tpu_custom_call.1} parent=1 // pred_fallthru
      _
    // Predicated region
    $region10: #{tpu_custom_call.1} parent=1 // pred_check
      _
    $region11: #{tpu_custom_call.1} parent=1 // pred_check_branch
      %38 = sbr.rel (0) target = $region13
    $region12: #{tpu_custom_call.1} parent=1 // pred_region
      _
    $region13: #{tpu_custom_call.1} parent=1 // pred_fallthru
      _
    // Predicated region
    $region14: #{tpu_custom_call.1} parent=1 // pred_check
      _
    $region15: #{tpu_custom_call.1} parent=1 // pred_check_branch
      %40 = sbr.rel (0) target = $region17
    $region16: #{tpu_custom_call.1} parent=1 // pred_region
      %s42 = ssub.s32 12288, 12288
      %43 = vsyncadd [#allocation6], %s42
      %s44 = sshll.u32 [#allocation7], 4
      %s45 = int_to_ptr.vmem [resolvable:$true] %s44
      %50 = dma.hbm_to_vmem [thread:$0]  %s3, 12288, %s45, [#allocation6], 384, 384, 24
    $region17: #{tpu_custom_call.1} parent=1 // pred_fallthru
      _
    // Predicated region
    $region18: #{tpu_custom_call.1} parent=1 // pred_check
      _
    $region19: #{tpu_custom_call.1} parent=1 // pred_check_branch
      %52 = sbr.rel (0) target = $region21
    $region20: #{tpu_custom_call.1} parent=1 // pred_region
      _
    $region21: #{tpu_custom_call.1} parent=1 // pred_fallthru
      _
    // Predicated region
    $region22: #{tpu_custom_call.1} parent=1 // pred_check
      _
    $region23: #{tpu_custom_call.1} parent=1 // pred_check_branch
      %54 = sbr.rel (0) target = $region25
    $region24: #{tpu_custom_call.1} parent=1 // pred_region
      %55 = dma.done [#allocation3], 6656
    $region25: #{tpu_custom_call.1} parent=1 // pred_fallthru
      _
    // Predicated region
    $region26: #{tpu_custom_call.1} parent=1 // pred_check
      _
    $region27: #{tpu_custom_call.1} parent=1 // pred_check_branch
      %57 = sbr.rel (0) target = $region29
    $region28: #{tpu_custom_call.1} parent=1 // pred_region
      %58 = dma.done [#allocation6], 8192
    $region29: #{tpu_custom_call.1} parent=1 // pred_fallthru
      _
    // Predicated region
    $region30: #{tpu_custom_call.1} parent=1 // pred_check
      _
    $region31: #{tpu_custom_call.1} parent=1 // pred_check_branch
      %60 = sbr.rel (0) target = $region33
    $region32: #{tpu_custom_call.1} parent=1 // pred_region
      %61 = dma.done [#allocation6], 12288
    $region33: #{tpu_custom_call.1} parent=1 // pred_fallthru
      _
    %v62 = vld [vmem:[#allocation2] sm:$0xff]
    %v63 = vld [vmem:[#allocation2 + $0x8] sm:$0xff]
    %v64 = vld [vmem:[#allocation2 + $0x10] sm:$0xff]
    %v65 = vld [vmem:[#allocation2 + $0x18] sm:$0xff]
    %v66 = vld [vmem:[#allocation2 + $0x20] sm:$0xff]
    %v67 = vld [vmem:[#allocation2 + $0x28] sm:$0xff]
    %v68 = vld [vmem:[#allocation2 + $0x30] sm:$0xff]
    %v69 = vld [vmem:[#allocation2 + $0x38] sm:$0xff]
    %v70 = vld [vmem:[#allocation2 + $0x40] sm:$0xff]
    %v71 = vld [vmem:[#allocation2 + $0x48] sm:$0xff]
    %v72 = vld [vmem:[#allocation2 + $0x50] sm:$0xff]
    %v73 = vld [vmem:[#allocation2 + $0x58] sm:$0xff]
    %v74 = vld [vmem:[#allocation2 + $0x60] sm:$0xff]
    %v75 = vld [vmem:[#allocation2 + $0x68] sm:$0xff]
    %v76 = vld [vmem:[#allocation2 + $0x70] sm:$0xff]
    %v77 = vld [vmem:[#allocation2 + $0x78] sm:$0xff]
    %v78 = vld [vmem:[#allocation2 + $0x80] sm:$0xff]
    %v79 = vld [vmem:[#allocation2 + $0x88] sm:$0xff]
    %v80 = vld [vmem:[#allocation2 + $0x90] sm:$0xff]
    %v81 = vld [vmem:[#allocation2 + $0x98] sm:$0xff]
    %v82 = vld [vmem:[#allocation2 + $0xa0] sm:$0xff]
    %v83 = vld [vmem:[#allocation2 + $0xa8] sm:$0xff]
    %v84 = vld [vmem:[#allocation2 + $0xb0] sm:$0xff]
    %v85 = vld [vmem:[#allocation2 + $0xb8] sm:$0xff]
    %v86 = vld [vmem:[#allocation2 + $0xc0] sm:$0xff]
    %v87 = vld [vmem:[#allocation2 + $0xc8] sm:$0xff]
    %v88 = vld [vmem:[#allocation2 + $0xd0] sm:$0xff]
    %v89 = vld [vmem:[#allocation2 + $0xd8] sm:$0xff]
    %v90 = vld [vmem:[#allocation2 + $0xe0] sm:$0xff]
    %v91 = vld [vmem:[#allocation2 + $0xe8] sm:$0xff]
    %v92 = vld [vmem:[#allocation2 + $0xf0] sm:$0xff]
    %v93 = vld [vmem:[#allocation2 + $0xf8] sm:$0xff]
    %v94 = vld [vmem:[#allocation2 + $0x100] sm:$0xff]
    %v95 = vld [vmem:[#allocation2 + $0x108] sm:$0xff]
    %v96 = vld [vmem:[#allocation2 + $0x110] sm:$0xff]
    %v97 = vld [vmem:[#allocation2 + $0x118] sm:$0xff]
    %v98 = vld [vmem:[#allocation2 + $0x120] sm:$0xff]
    %v99 = vld [vmem:[#allocation2 + $0x128] sm:$0xff]
    %v100 = vld [vmem:[#allocation2 + $0x130] sm:$0xff]
    %v101 = vld [vmem:[#allocation2 + $0x138] sm:$0xff]
    %v102 = vld [vmem:[#allocation2 + $0x140] sm:$0xff]
    %v103 = vld [vmem:[#allocation2 + $0x148] sm:$0xff]
    %v104 = vld [vmem:[#allocation2 + $0x150] sm:$0xff]
    %v105 = vld [vmem:[#allocation2 + $0x158] sm:$0xff]
    %v106 = vld [vmem:[#allocation2 + $0x160] sm:$0xff]
    %v107 = vld [vmem:[#allocation2 + $0x168] sm:$0xff]
    %v108 = vld [vmem:[#allocation2 + $0x170] sm:$0xff]
    %v109 = vld [vmem:[#allocation2 + $0x178] sm:$0xff]
    %v110 = vld [vmem:[#allocation2 + $0x180] sm:$0xff]
    %v111 = vld [vmem:[#allocation2 + $0x188] sm:$0xff]
    %v112 = vld [vmem:[#allocation2 + $0x190] sm:$0xff]
    %v113 = vld [vmem:[#allocation2 + $0x198] sm:$0xff]
    %v114 = vld [vmem:[#allocation5] sm:$0xff]
    %v115 = vld [vmem:[#allocation5 + $0x8] sm:$0xff]
    %v116 = vld [vmem:[#allocation5 + $0x10] sm:$0xff]
    %v117 = vld [vmem:[#allocation5 + $0x18] sm:$0xff]
    %v118 = vld [vmem:[#allocation5 + $0x20] sm:$0xff]
    %v119 = vld [vmem:[#allocation5 + $0x28] sm:$0xff]
    %v120 = vld [vmem:[#allocation5 + $0x30] sm:$0xff]
    %v121 = vld [vmem:[#allocation5 + $0x38] sm:$0xff]
    %v122 = vld [vmem:[#allocation5 + $0x40] sm:$0xff]
    %v123 = vld [vmem:[#allocation5 + $0x48] sm:$0xff]
    %v124 = vld [vmem:[#allocation5 + $0x50] sm:$0xff]
    %v125 = vld [vmem:[#allocation5 + $0x58] sm:$0xff]
    %v126 = vld [vmem:[#allocation5 + $0x60] sm:$0xff]
    %v127 = vld [vmem:[#allocation5 + $0x68] sm:$0xff]
    %v128 = vld [vmem:[#allocation5 + $0x70] sm:$0xff]
    %v129 = vld [vmem:[#allocation5 + $0x78] sm:$0xff]
    %v130 = vld [vmem:[#allocation5 + $0x80] sm:$0xff]
    %v131 = vld [vmem:[#allocation5 + $0x88] sm:$0xff]
    %v132 = vld [vmem:[#allocation5 + $0x90] sm:$0xff]
    %v133 = vld [vmem:[#allocation5 + $0x98] sm:$0xff]
    %v134 = vld [vmem:[#allocation5 + $0xa0] sm:$0xff]
    %v135 = vld [vmem:[#allocation5 + $0xa8] sm:$0xff]
    %v136 = vld [vmem:[#allocation5 + $0xb0] sm:$0xff]
    %v137 = vld [vmem:[#allocation5 + $0xb8] sm:$0xff]
    %v138 = vld [vmem:[#allocation5 + $0xc0] sm:$0xff]
    %v139 = vld [vmem:[#allocation5 + $0xc8] sm:$0xff]
    %v140 = vld [vmem:[#allocation5 + $0xd0] sm:$0xff]
    %v141 = vld [vmem:[#allocation5 + $0xd8] sm:$0xff]
    %v142 = vld [vmem:[#allocation5 + $0xe0] sm:$0xff]
    %v143 = vld [vmem:[#allocation5 + $0xe8] sm:$0xff]
    %v144 = vld [vmem:[#allocation5 + $0xf0] sm:$0xff]
    %v145 = vld [vmem:[#allocation5 + $0xf8] sm:$0xff]
    %v146 = vld [vmem:[#allocation5 + $0x100] sm:$0xff]
    %v147 = vld [vmem:[#allocation5 + $0x108] sm:$0xff]
    %v148 = vld [vmem:[#allocation5 + $0x110] sm:$0xff]
    %v149 = vld [vmem:[#allocation5 + $0x118] sm:$0xff]
    %v150 = vld [vmem:[#allocation5 + $0x120] sm:$0xff]
    %v151 = vld [vmem:[#allocation5 + $0x128] sm:$0xff]
    %v152 = vld [vmem:[#allocation5 + $0x130] sm:$0xff]
    %v153 = vld [vmem:[#allocation5 + $0x138] sm:$0xff]
    %v154 = vld [vmem:[#allocation5 + $0x140] sm:$0xff]
    %v155 = vld [vmem:[#allocation5 + $0x148] sm:$0xff]
    %v156 = vld [vmem:[#allocation5 + $0x150] sm:$0xff]
    %v157 = vld [vmem:[#allocation5 + $0x158] sm:$0xff]
    %v158 = vld [vmem:[#allocation5 + $0x160] sm:$0xff]
    %v159 = vld [vmem:[#allocation5 + $0x168] sm:$0xff]
    %v160 = vld [vmem:[#allocation5 + $0x170] sm:$0xff]
    %v161 = vld [vmem:[#allocation5 + $0x178] sm:$0xff]
    %v162 = vld [vmem:[#allocation5 + $0x180] sm:$0xff]
    %v163 = vld [vmem:[#allocation5 + $0x188] sm:$0xff]
    %v164 = vld [vmem:[#allocation5 + $0x190] sm:$0xff]
    %v165 = vld [vmem:[#allocation5 + $0x198] sm:$0xff]
    %v166 = vld [vmem:[#allocation5 + $0x1a0] sm:$0xff]
    %v167 = vld [vmem:[#allocation5 + $0x1a8] sm:$0xff]
    %v168 = vld [vmem:[#allocation5 + $0x1b0] sm:$0xff]
    %v169 = vld [vmem:[#allocation5 + $0x1b8] sm:$0xff]
    %v170 = vld [vmem:[#allocation5 + $0x1c0] sm:$0xff]
    %v171 = vld [vmem:[#allocation5 + $0x1c8] sm:$0xff]
    %v172 = vld [vmem:[#allocation5 + $0x1d0] sm:$0xff]
    %v173 = vld [vmem:[#allocation5 + $0x1d8] sm:$0xff]
    %v174 = vld [vmem:[#allocation5 + $0x1e0] sm:$0xff]
    %v175 = vld [vmem:[#allocation5 + $0x1e8] sm:$0xff]
    %v176 = vld [vmem:[#allocation5 + $0x1f0] sm:$0xff]
    %v177 = vld [vmem:[#allocation5 + $0x1f8] sm:$0xff]
    %v178 = vld [vmem:[%s2] sm:$0x3]
    %v180 = vlaneseq
    %v181 = vshrl.u32 %v180, 7
    %v182 = vsub.s32 0, %v181
    %v183 = vrot.slane %v178, %v182
    %v184 = vlaneseq
    %v185 = vshrl.u32 %v184, 7
    %v186 = vsub.s32 1, %v185
    %v187 = vrot.slane %v178, %v186
    %v242 = vunpack.c.l.b16 %v62
    %v243 = vunpack.c.h.b16 %v62
    %v244 = vunpack.c.l.b16 %v63
    %v245 = vunpack.c.h.b16 %v63
    %v246 = vunpack.c.l.b16 %v64
    %v247 = vunpack.c.h.b16 %v64
    %v248 = vunpack.c.l.b16 %v65
    %v249 = vunpack.c.h.b16 %v65
    %v250 = vunpack.c.l.b16 %v66
    %v251 = vunpack.c.h.b16 %v66
    %v252 = vunpack.c.l.b16 %v67
    %v253 = vunpack.c.h.b16 %v67
    %v254 = vunpack.c.l.b16 %v68
    %v255 = vunpack.c.h.b16 %v68
    %v256 = vunpack.c.l.b16 %v69
    %v257 = vunpack.c.h.b16 %v69
    %v258 = vunpack.c.l.b16 %v70
    %v259 = vunpack.c.h.b16 %v70
    %v260 = vunpack.c.l.b16 %v71
    %v261 = vunpack.c.h.b16 %v71
    %v262 = vunpack.c.l.b16 %v72
    %v263 = vunpack.c.h.b16 %v72
    %v264 = vunpack.c.l.b16 %v73
    %v265 = vunpack.c.h.b16 %v73
    %v266 = vunpack.c.l.b16 %v74
    %v267 = vunpack.c.h.b16 %v74
    %v268 = vunpack.c.l.b16 %v75
    %v269 = vunpack.c.h.b16 %v75
    %v270 = vunpack.c.l.b16 %v76
    %v271 = vunpack.c.h.b16 %v76
    %v272 = vunpack.c.l.b16 %v77
    %v273 = vunpack.c.h.b16 %v77
    %v274 = vunpack.c.l.b16 %v78
    %v275 = vunpack.c.h.b16 %v78
    %v276 = vunpack.c.l.b16 %v79
    %v277 = vunpack.c.h.b16 %v79
    %v278 = vunpack.c.l.b16 %v80
    %v279 = vunpack.c.h.b16 %v80
    %v280 = vunpack.c.l.b16 %v81
    %v281 = vunpack.c.h.b16 %v81
    %v282 = vunpack.c.l.b16 %v82
    %v283 = vunpack.c.h.b16 %v82
    %v284 = vunpack.c.l.b16 %v83
    %v285 = vunpack.c.h.b16 %v83
    %v286 = vunpack.c.l.b16 %v84
    %v287 = vunpack.c.h.b16 %v84
    %v288 = vunpack.c.l.b16 %v85
    %v289 = vunpack.c.h.b16 %v85
    %v290 = vunpack.c.l.b16 %v86
    %v291 = vunpack.c.h.b16 %v86
    %v292 = vunpack.c.l.b16 %v87
    %v293 = vunpack.c.h.b16 %v87
    %v294 = vunpack.c.l.b16 %v88
    %v295 = vunpack.c.h.b16 %v88
    %v296 = vunpack.c.l.b16 %v89
    %v297 = vunpack.c.h.b16 %v89
    %v298 = vunpack.c.l.b16 %v90
    %v299 = vunpack.c.h.b16 %v90
    %v300 = vunpack.c.l.b16 %v91
    %v301 = vunpack.c.h.b16 %v91
    %v302 = vunpack.c.l.b16 %v92
    %v303 = vunpack.c.h.b16 %v92
    %v304 = vunpack.c.l.b16 %v93
    %v305 = vunpack.c.h.b16 %v93
    %v306 = vunpack.c.l.b16 %v94
    %v307 = vunpack.c.h.b16 %v94
    %v308 = vunpack.c.l.b16 %v95
    %v309 = vunpack.c.h.b16 %v95
    %v310 = vunpack.c.l.b16 %v96
    %v311 = vunpack.c.h.b16 %v96
    %v312 = vunpack.c.l.b16 %v97
    %v313 = vunpack.c.h.b16 %v97
    %v314 = vunpack.c.l.b16 %v98
    %v315 = vunpack.c.h.b16 %v98
    %v316 = vunpack.c.l.b16 %v99
    %v317 = vunpack.c.h.b16 %v99
    %v318 = vunpack.c.l.b16 %v100
    %v319 = vunpack.c.h.b16 %v100
    %v320 = vunpack.c.l.b16 %v101
    %v321 = vunpack.c.h.b16 %v101
    %v322 = vunpack.c.l.b16 %v102
    %v323 = vunpack.c.h.b16 %v102
    %v324 = vunpack.c.l.b16 %v103
    %v325 = vunpack.c.h.b16 %v103
    %v326 = vunpack.c.l.b16 %v104
    %v327 = vunpack.c.h.b16 %v104
    %v328 = vunpack.c.l.b16 %v105
    %v329 = vunpack.c.h.b16 %v105
    %v330 = vunpack.c.l.b16 %v106
    %v331 = vunpack.c.h.b16 %v106
    %v332 = vunpack.c.l.b16 %v107
    %v333 = vunpack.c.h.b16 %v107
    %v334 = vunpack.c.l.b16 %v108
    %v335 = vunpack.c.h.b16 %v108
    %v336 = vunpack.c.l.b16 %v109
    %v337 = vunpack.c.h.b16 %v109
    %v338 = vunpack.c.l.b16 %v110
    %v339 = vunpack.c.h.b16 %v110
    %v340 = vunpack.c.l.b16 %v111
    %v341 = vunpack.c.h.b16 %v111
    %v342 = vunpack.c.l.b16 %v112
    %v343 = vunpack.c.h.b16 %v112
    %v344 = vunpack.c.l.b16 %v113
    %v345 = vunpack.c.h.b16 %v113
    %v346 = vpack.c.b16 %v246, %v242
    %v347 = vpack.c.b16 %v247, %v243
    %v348 = vpack.c.b16 %v248, %v244
    %v349 = vpack.c.b16 %v249, %v245
    %v350 = vpack.c.b16 %v254, %v250
    %v351 = vpack.c.b16 %v255, %v251
    %v352 = vpack.c.b16 %v256, %v252
    %v353 = vpack.c.b16 %v257, %v253
    %v354 = vpack.c.b16 %v262, %v258
    %v355 = vpack.c.b16 %v263, %v259
    %v356 = vpack.c.b16 %v264, %v260
    %v357 = vpack.c.b16 %v265, %v261
    %v358 = vpack.c.b16 %v270, %v266
    %v359 = vpack.c.b16 %v271, %v267
    %v360 = vpack.c.b16 %v272, %v268
    %v361 = vpack.c.b16 %v273, %v269
    %v362 = vpack.c.b16 %v278, %v274
    %v363 = vpack.c.b16 %v279, %v275
    %v364 = vpack.c.b16 %v280, %v276
    %v365 = vpack.c.b16 %v281, %v277
    %v366 = vpack.c.b16 %v286, %v282
    %v367 = vpack.c.b16 %v287, %v283
    %v368 = vpack.c.b16 %v288, %v284
    %v369 = vpack.c.b16 %v289, %v285
    %v370 = vpack.c.b16 %v294, %v290
    %v371 = vpack.c.b16 %v295, %v291
    %v372 = vpack.c.b16 %v296, %v292
    %v373 = vpack.c.b16 %v297, %v293
    %v374 = vpack.c.b16 %v302, %v298
    %v375 = vpack.c.b16 %v303, %v299
    %v376 = vpack.c.b16 %v304, %v300
    %v377 = vpack.c.b16 %v305, %v301
    %v378 = vpack.c.b16 %v310, %v306
    %v379 = vpack.c.b16 %v311, %v307
    %v380 = vpack.c.b16 %v312, %v308
    %v381 = vpack.c.b16 %v313, %v309
    %v382 = vpack.c.b16 %v318, %v314
    %v383 = vpack.c.b16 %v319, %v315
    %v384 = vpack.c.b16 %v320, %v316
    %v385 = vpack.c.b16 %v321, %v317
    %v386 = vpack.c.b16 %v326, %v322
    %v387 = vpack.c.b16 %v327, %v323
    %v388 = vpack.c.b16 %v328, %v324
    %v389 = vpack.c.b16 %v329, %v325
    %v390 = vpack.c.b16 %v334, %v330
    %v391 = vpack.c.b16 %v335, %v331
    %v392 = vpack.c.b16 %v336, %v332
    %v393 = vpack.c.b16 %v337, %v333
    %v394 = vpack.c.b16 %v342, %v338
    %v395 = vpack.c.b16 %v343, %v339
    %v396 = vpack.c.b16 %v344, %v340
    %v397 = vpack.c.b16 %v345, %v341
    %v514 = vunpack.c.l.b16 %v114
    %v515 = vunpack.c.h.b16 %v114
    %v516 = vunpack.c.l.b16 %v115
    %v517 = vunpack.c.h.b16 %v115
    %v518 = vunpack.c.l.b16 %v116
    %v519 = vunpack.c.h.b16 %v116
    %v520 = vunpack.c.l.b16 %v117
    %v521 = vunpack.c.h.b16 %v117
    %v522 = vunpack.c.l.b16 %v118
    %v523 = vunpack.c.h.b16 %v118
    %v524 = vunpack.c.l.b16 %v119
    %v525 = vunpack.c.h.b16 %v119
    %v526 = vunpack.c.l.b16 %v120
    %v527 = vunpack.c.h.b16 %v120
    %v528 = vunpack.c.l.b16 %v121
    %v529 = vunpack.c.h.b16 %v121
    %v530 = vunpack.c.l.b16 %v122
    %v531 = vunpack.c.h.b16 %v122
    %v532 = vunpack.c.l.b16 %v123
    %v533 = vunpack.c.h.b16 %v123
    %v534 = vunpack.c.l.b16 %v124
    %v535 = vunpack.c.h.b16 %v124
    %v536 = vunpack.c.l.b16 %v125
    %v537 = vunpack.c.h.b16 %v125
    %v538 = vunpack.c.l.b16 %v126
    %v539 = vunpack.c.h.b16 %v126
    %v540 = vunpack.c.l.b16 %v127
    %v541 = vunpack.c.h.b16 %v127
    %v542 = vunpack.c.l.b16 %v128
    %v543 = vunpack.c.h.b16 %v128
    %v544 = vunpack.c.l.b16 %v129
    %v545 = vunpack.c.h.b16 %v129
    %v546 = vunpack.c.l.b16 %v130
    %v547 = vunpack.c.h.b16 %v130
    %v548 = vunpack.c.l.b16 %v131
    %v549 = vunpack.c.h.b16 %v131
    %v550 = vunpack.c.l.b16 %v132
    %v551 = vunpack.c.h.b16 %v132
    %v552 = vunpack.c.l.b16 %v133
    %v553 = vunpack.c.h.b16 %v133
    %v554 = vunpack.c.l.b16 %v134
    %v555 = vunpack.c.h.b16 %v134
    %v556 = vunpack.c.l.b16 %v135
    %v557 = vunpack.c.h.b16 %v135
    %v558 = vunpack.c.l.b16 %v136
    %v559 = vunpack.c.h.b16 %v136
    %v560 = vunpack.c.l.b16 %v137
    %v561 = vunpack.c.h.b16 %v137
    %v562 = vunpack.c.l.b16 %v138
    %v563 = vunpack.c.h.b16 %v138
    %v564 = vunpack.c.l.b16 %v139
    %v565 = vunpack.c.h.b16 %v139
    %v566 = vunpack.c.l.b16 %v140
    %v567 = vunpack.c.h.b16 %v140
    %v568 = vunpack.c.l.b16 %v141
    %v569 = vunpack.c.h.b16 %v141
    %v570 = vunpack.c.l.b16 %v142
    %v571 = vunpack.c.h.b16 %v142
    %v572 = vunpack.c.l.b16 %v143
    %v573 = vunpack.c.h.b16 %v143
    %v574 = vunpack.c.l.b16 %v144
    %v575 = vunpack.c.h.b16 %v144
    %v576 = vunpack.c.l.b16 %v145
    %v577 = vunpack.c.h.b16 %v145
    %v578 = vunpack.c.l.b16 %v146
    %v579 = vunpack.c.h.b16 %v146
    %v580 = vunpack.c.l.b16 %v147
    %v581 = vunpack.c.h.b16 %v147
    %v582 = vunpack.c.l.b16 %v148
    %v583 = vunpack.c.h.b16 %v148
    %v584 = vunpack.c.l.b16 %v149
    %v585 = vunpack.c.h.b16 %v149
    %v586 = vunpack.c.l.b16 %v150
    %v587 = vunpack.c.h.b16 %v150
    %v588 = vunpack.c.l.b16 %v151
    %v589 = vunpack.c.h.b16 %v151
    %v590 = vunpack.c.l.b16 %v152
    %v591 = vunpack.c.h.b16 %v152
    %v592 = vunpack.c.l.b16 %v153
    %v593 = vunpack.c.h.b16 %v153
    %v594 = vunpack.c.l.b16 %v154
    %v595 = vunpack.c.h.b16 %v154
    %v596 = vunpack.c.l.b16 %v155
    %v597 = vunpack.c.h.b16 %v155
    %v598 = vunpack.c.l.b16 %v156
    %v599 = vunpack.c.h.b16 %v156
    %v600 = vunpack.c.l.b16 %v157
    %v601 = vunpack.c.h.b16 %v157
    %v602 = vunpack.c.l.b16 %v158
    %v603 = vunpack.c.h.b16 %v158
    %v604 = vunpack.c.l.b16 %v159
    %v605 = vunpack.c.h.b16 %v159
    %v606 = vunpack.c.l.b16 %v160
    %v607 = vunpack.c.h.b16 %v160
    %v608 = vunpack.c.l.b16 %v161
    %v609 = vunpack.c.h.b16 %v161
    %v610 = vunpack.c.l.b16 %v162
    %v611 = vunpack.c.h.b16 %v162
    %v612 = vunpack.c.l.b16 %v163
    %v613 = vunpack.c.h.b16 %v163
    %v614 = vunpack.c.l.b16 %v164
    %v615 = vunpack.c.h.b16 %v164
    %v616 = vunpack.c.l.b16 %v165
    %v617 = vunpack.c.h.b16 %v165
    %v618 = vunpack.c.l.b16 %v166
    %v619 = vunpack.c.h.b16 %v166
    %v620 = vunpack.c.l.b16 %v167
    %v621 = vunpack.c.h.b16 %v167
    %v622 = vunpack.c.l.b16 %v168
    %v623 = vunpack.c.h.b16 %v168
    %v624 = vunpack.c.l.b16 %v169
    %v625 = vunpack.c.h.b16 %v169
    %v626 = vunpack.c.l.b16 %v170
    %v627 = vunpack.c.h.b16 %v170
    %v628 = vunpack.c.l.b16 %v171
    %v629 = vunpack.c.h.b16 %v171
    %v630 = vunpack.c.l.b16 %v172
    %v631 = vunpack.c.h.b16 %v172
    %v632 = vunpack.c.l.b16 %v173
    %v633 = vunpack.c.h.b16 %v173
    %v634 = vunpack.c.l.b16 %v174
    %v635 = vunpack.c.h.b16 %v174
    %v636 = vunpack.c.l.b16 %v175
    %v637 = vunpack.c.h.b16 %v175
    %v638 = vunpack.c.l.b16 %v176
    %v639 = vunpack.c.h.b16 %v176
    %v640 = vunpack.c.l.b16 %v177
    %v641 = vunpack.c.h.b16 %v177
    %v642 = vpack.c.b16 %v516, %v514
    %v643 = vpack.c.b16 %v517, %v515
    %v644 = vpack.c.b16 %v520, %v518
    %v645 = vpack.c.b16 %v521, %v519
    %v646 = vpack.c.b16 %v524, %v522
    %v647 = vpack.c.b16 %v525, %v523
    %v648 = vpack.c.b16 %v528, %v526
    %v649 = vpack.c.b16 %v529, %v527
    %v650 = vpack.c.b16 %v532, %v530
    %v651 = vpack.c.b16 %v533, %v531
    %v652 = vpack.c.b16 %v536, %v534
    %v653 = vpack.c.b16 %v537, %v535
    %v654 = vpack.c.b16 %v540, %v538
    %v655 = vpack.c.b16 %v541, %v539
    %v656 = vpack.c.b16 %v544, %v542
    %v657 = vpack.c.b16 %v545, %v543
    %v658 = vpack.c.b16 %v548, %v546
    %v659 = vpack.c.b16 %v549, %v547
    %v660 = vpack.c.b16 %v552, %v550
    %v661 = vpack.c.b16 %v553, %v551
    %v662 = vpack.c.b16 %v556, %v554
    %v663 = vpack.c.b16 %v557, %v555
    %v664 = vpack.c.b16 %v560, %v558
    %v665 = vpack.c.b16 %v561, %v559
    %v666 = vpack.c.b16 %v564, %v562
    %v667 = vpack.c.b16 %v565, %v563
    %v668 = vpack.c.b16 %v568, %v566
    %v669 = vpack.c.b16 %v569, %v567
    %v670 = vpack.c.b16 %v572, %v570
    %v671 = vpack.c.b16 %v573, %v571
    %v672 = vpack.c.b16 %v576, %v574
    %v673 = vpack.c.b16 %v577, %v575
    %v674 = vpack.c.b16 %v580, %v578
    %v675 = vpack.c.b16 %v581, %v579
    %v676 = vpack.c.b16 %v584, %v582
    %v677 = vpack.c.b16 %v585, %v583
    %v678 = vpack.c.b16 %v588, %v586
    %v679 = vpack.c.b16 %v589, %v587
    %v680 = vpack.c.b16 %v592, %v590
    %v681 = vpack.c.b16 %v593, %v591
    %v682 = vpack.c.b16 %v596, %v594
    %v683 = vpack.c.b16 %v597, %v595
    %v684 = vpack.c.b16 %v600, %v598
    %v685 = vpack.c.b16 %v601, %v599
    %v686 = vpack.c.b16 %v604, %v602
    %v687 = vpack.c.b16 %v605, %v603
    %v688 = vpack.c.b16 %v608, %v606
    %v689 = vpack.c.b16 %v609, %v607
    %v690 = vpack.c.b16 %v612, %v610
    %v691 = vpack.c.b16 %v613, %v611
    %v692 = vpack.c.b16 %v616, %v614
    %v693 = vpack.c.b16 %v617, %v615
    %v694 = vpack.c.b16 %v620, %v618
    %v695 = vpack.c.b16 %v621, %v619
    %v696 = vpack.c.b16 %v624, %v622
    %v697 = vpack.c.b16 %v625, %v623
    %v698 = vpack.c.b16 %v628, %v626
    %v699 = vpack.c.b16 %v629, %v627
    %v700 = vpack.c.b16 %v632, %v630
    %v701 = vpack.c.b16 %v633, %v631
    %v702 = vpack.c.b16 %v636, %v634
    %v703 = vpack.c.b16 %v637, %v635
    %v704 = vpack.c.b16 %v640, %v638
    %v705 = vpack.c.b16 %v641, %v639
    %770 = vmatprep.subr.bf16.mxu0 %v643
    %771 = vmatpush1.bf16.msra.mxu0 %v642
    %772 = vmatprep.subr.bf16.mxu0 %v645
    %773 = vmatpush1.bf16.msra.mxu0 %v644
    %774 = vmatprep.subr.bf16.mxu0 %v647
    %775 = vmatpush1.bf16.msra.mxu0 %v646
    %776 = vmatprep.subr.bf16.mxu0 %v649
    %777 = vmatpush1.bf16.msra.mxu0 %v648
    %778 = vmatprep.subr.bf16.mxu0 %v651
    %779 = vmatpush1.bf16.msra.mxu0 %v650
    %780 = vmatprep.subr.bf16.mxu0 %v653
    %781 = vmatpush1.bf16.msra.mxu0 %v652
    %782 = vmatprep.subr.bf16.mxu0 %v655
    %783 = vmatpush1.bf16.msra.mxu0 %v654
    %784 = vmatprep.subr.bf16.mxu0 %v657
    %785 = vmatpush1.bf16.msra.mxu0 %v656
    %786 = vmatprep.subr.bf16.mxu0 %v659
    %787 = vmatpush1.bf16.msra.mxu0 %v658
    %788 = vmatprep.subr.bf16.mxu0 %v661
    %789 = vmatpush1.bf16.msra.mxu0 %v660
    %790 = vmatprep.subr.bf16.mxu0 %v663
    %791 = vmatpush1.bf16.msra.mxu0 %v662
    %792 = vmatprep.subr.bf16.mxu0 %v665
    %793 = vmatpush1.bf16.msra.mxu0 %v664
    %794 = vmatprep.subr.bf16.mxu0 %v667
    %795 = vmatpush1.bf16.msra.mxu0 %v666
    %796 = vmatprep.subr.bf16.mxu0 %v669
    %797 = vmatpush1.bf16.msra.mxu0 %v668
    %798 = vmatprep.subr.bf16.mxu0 %v671
    %799 = vmatpush1.bf16.msra.mxu0 %v670
    %800 = vmatprep.subr.bf16.mxu0 %v673
    %801 = vmatpush1.bf16.msra.mxu0 %v672
    %802 = vmatprep.mubr.bf16.mxu0 %v347
    %803 = vmatmul.mubr.bf16.gmra.mrb[0].mxu0 %v346
    %v804 = vpop.f32.mrb[0].mxu0
    %v805 = vadd.f32 %v183, %v804
    %v806 = vpop.f32.mrb[0].mxu0
    %v807 = vadd.f32 %v187, %v806
    %v808 = vpop.f32.mrb[0].mxu0
    %v809 = vadd.f32 %v183, %v808
    %v810 = vpop.f32.mrb[0].mxu0
    %v811 = vadd.f32 %v187, %v810
    %812 = vmatprep.mubr.bf16.mxu0 %v351
    %813 = vmatmul.mubr.bf16.gmra.mrb[0].mxu0 %v350
    %v814 = vpop.f32.mrb[0].mxu0
    %v815 = vadd.f32 %v183, %v814
    %v816 = vpop.f32.mrb[0].mxu0
    %v817 = vadd.f32 %v187, %v816
    %v818 = vpop.f32.mrb[0].mxu0
    %v819 = vadd.f32 %v183, %v818
    %v820 = vpop.f32.mrb[0].mxu0
    %v821 = vadd.f32 %v187, %v820
    %822 = vmatprep.mubr.bf16.mxu0 %v355
    %823 = vmatmul.mubr.bf16.gmra.mrb[0].mxu0 %v354
    %v824 = vpop.f32.mrb[0].mxu0
    %v825 = vadd.f32 %v183, %v824
    %v826 = vpop.f32.mrb[0].mxu0
    %v827 = vadd.f32 %v187, %v826
    %v828 = vpop.f32.mrb[0].mxu0
    %v829 = vadd.f32 %v183, %v828
    %v830 = vpop.f32.mrb[0].mxu0
    %v831 = vadd.f32 %v187, %v830
    %832 = vmatprep.mubr.bf16.mxu0 %v359
    %833 = vmatmul.mubr.bf16.gmra.mrb[0].mxu0 %v358
    %v834 = vpop.f32.mrb[0].mxu0
    %v835 = vadd.f32 %v183, %v834
    %v836 = vpop.f32.mrb[0].mxu0
    %v837 = vadd.f32 %v187, %v836
    %v838 = vpop.f32.mrb[0].mxu0
    %v839 = vadd.f32 %v183, %v838
    %v840 = vpop.f32.mrb[0].mxu0
    %v841 = vadd.f32 %v187, %v840
    %842 = vmatprep.mubr.bf16.mxu0 %v363
    %843 = vmatmul.mubr.bf16.gmra.mrb[0].mxu0 %v362
    %v844 = vpop.f32.mrb[0].mxu0
    %v845 = vadd.f32 %v183, %v844
    %v846 = vpop.f32.mrb[0].mxu0
    %v847 = vadd.f32 %v187, %v846
    %v848 = vpop.f32.mrb[0].mxu0
    %v849 = vadd.f32 %v183, %v848
    %v850 = vpop.f32.mrb[0].mxu0
    %v851 = vadd.f32 %v187, %v850
    %852 = vmatprep.mubr.bf16.mxu0 %v367
    %853 = vmatmul.mubr.bf16.gmra.mrb[0].mxu0 %v366
    %v854 = vpop.f32.mrb[0].mxu0
    %v855 = vadd.f32 %v183, %v854
    %v856 = vpop.f32.mrb[0].mxu0
    %v857 = vadd.f32 %v187, %v856
    %v858 = vpop.f32.mrb[0].mxu0
    %v859 = vadd.f32 %v183, %v858
    %v860 = vpop.f32.mrb[0].mxu0
    %v861 = vadd.f32 %v187, %v860
    %862 = vmatprep.mubr.bf16.mxu0 %v371
    %863 = vmatmul.mubr.bf16.gmra.mrb[0].mxu0 %v370
    %v864 = vpop.f32.mrb[0].mxu0
    %v865 = vadd.f32 %v183, %v864
    %v866 = vpop.f32.mrb[0].mxu0
    %v867 = vadd.f32 %v187, %v866
    %v868 = vpop.f32.mrb[0].mxu0
    %v869 = vadd.f32 %v183, %v868
    %v870 = vpop.f32.mrb[0].mxu0
    %v871 = vadd.f32 %v187, %v870
    %872 = vmatprep.mubr.bf16.mxu0 %v375
    %873 = vmatmul.mubr.bf16.gmra.mrb[0].mxu0 %v374
    %v874 = vpop.f32.mrb[0].mxu0
    %v875 = vadd.f32 %v183, %v874
    %v876 = vpop.f32.mrb[0].mxu0
    %v877 = vadd.f32 %v187, %v876
    %v878 = vpop.f32.mrb[0].mxu0
    %v879 = vadd.f32 %v183, %v878
    %v880 = vpop.f32.mrb[0].mxu0
    %v881 = vadd.f32 %v187, %v880
    %882 = vmatprep.mubr.bf16.mxu0 %v379
    %883 = vmatmul.mubr.bf16.gmra.mrb[0].mxu0 %v378
    %v884 = vpop.f32.mrb[0].mxu0
    %v885 = vadd.f32 %v183, %v884
    %v886 = vpop.f32.mrb[0].mxu0
    %v887 = vadd.f32 %v187, %v886
    %v888 = vpop.f32.mrb[0].mxu0
    %v889 = vadd.f32 %v183, %v888
    %v890 = vpop.f32.mrb[0].mxu0
    %v891 = vadd.f32 %v187, %v890
    %892 = vmatprep.mubr.bf16.mxu0 %v383
    %893 = vmatmul.mubr.bf16.gmra.mrb[0].mxu0 %v382
    %v894 = vpop.f32.mrb[0].mxu0
    %v895 = vadd.f32 %v183, %v894
    %v896 = vpop.f32.mrb[0].mxu0
    %v897 = vadd.f32 %v187, %v896
    %v898 = vpop.f32.mrb[0].mxu0
    %v899 = vadd.f32 %v183, %v898
    %v900 = vpop.f32.mrb[0].mxu0
    %v901 = vadd.f32 %v187, %v900
    %902 = vmatprep.mubr.bf16.mxu0 %v387
    %903 = vmatmul.mubr.bf16.gmra.mrb[0].mxu0 %v386
    %v904 = vpop.f32.mrb[0].mxu0
    %v905 = vadd.f32 %v183, %v904
    %v906 = vpop.f32.mrb[0].mxu0
    %v907 = vadd.f32 %v187, %v906
    %v908 = vpop.f32.mrb[0].mxu0
    %v909 = vadd.f32 %v183, %v908
    %v910 = vpop.f32.mrb[0].mxu0
    %v911 = vadd.f32 %v187, %v910
    %912 = vmatprep.mubr.bf16.mxu0 %v391
    %913 = vmatmul.mubr.bf16.gmra.mrb[0].mxu0 %v390
    %v914 = vpop.f32.mrb[0].mxu0
    %v915 = vadd.f32 %v183, %v914
    %v916 = vpop.f32.mrb[0].mxu0
    %v917 = vadd.f32 %v187, %v916
    %v918 = vpop.f32.mrb[0].mxu0
    %v919 = vadd.f32 %v183, %v918
    %v920 = vpop.f32.mrb[0].mxu0
    %v921 = vadd.f32 %v187, %v920
    %922 = vmatprep.mubr.bf16.mxu0 %v395
    %923 = vmatmul.mubr.bf16.gmra.mrb[0].mxu0 %v394
    %v924 = vpop.f32.mrb[0].mxu0
    %v925 = vadd.f32 %v183, %v924
    %v926 = vpop.f32.mrb[0].mxu0
    %v927 = vadd.f32 %v187, %v926
    %v928 = vpop.f32.mrb[0].mxu0
    %v929 = vadd.f32 %v183, %v928
    %v930 = vpop.f32.mrb[0].mxu0
    %v931 = vadd.f32 %v187, %v930
    %932 = vdwg.mxu0
    %933 = vmatprep.subr.bf16.mxu0 %v675
    %934 = vmatpush1.bf16.msra.mxu0 %v674
    %935 = vmatprep.subr.bf16.mxu0 %v677
    %936 = vmatpush1.bf16.msra.mxu0 %v676
    %937 = vmatprep.subr.bf16.mxu0 %v679
    %938 = vmatpush1.bf16.msra.mxu0 %v678
    %939 = vmatprep.subr.bf16.mxu0 %v681
    %940 = vmatpush1.bf16.msra.mxu0 %v680
    %941 = vmatprep.subr.bf16.mxu0 %v683
    %942 = vmatpush1.bf16.msra.mxu0 %v682
    %943 = vmatprep.subr.bf16.mxu0 %v685
    %944 = vmatpush1.bf16.msra.mxu0 %v684
    %945 = vmatprep.subr.bf16.mxu0 %v687
    %946 = vmatpush1.bf16.msra.mxu0 %v686
    %947 = vmatprep.subr.bf16.mxu0 %v689
    %948 = vmatpush1.bf16.msra.mxu0 %v688
    %949 = vmatprep.subr.bf16.mxu0 %v691
    %950 = vmatpush1.bf16.msra.mxu0 %v690
    %951 = vmatprep.subr.bf16.mxu0 %v693
    %952 = vmatpush1.bf16.msra.mxu0 %v692
    %953 = vmatprep.subr.bf16.mxu0 %v695
    %954 = vmatpush1.bf16.msra.mxu0 %v694
    %955 = vmatprep.subr.bf16.mxu0 %v697
    %956 = vmatpush1.bf16.msra.mxu0 %v696
    %957 = vmatprep.subr.bf16.mxu0 %v699
    %958 = vmatpush1.bf16.msra.mxu0 %v698
    %959 = vmatprep.subr.bf16.mxu0 %v701
    %960 = vmatpush1.bf16.msra.mxu0 %v700
    %961 = vmatprep.subr.bf16.mxu0 %v703
    %962 = vmatpush1.bf16.msra.mxu0 %v702
    %963 = vmatprep.subr.bf16.mxu0 %v705
    %964 = vmatpush1.bf16.msra.mxu0 %v704
    %965 = vmatprep.mubr.bf16.mxu0 %v349
    %966 = vmatmul.mubr.bf16.gmra.mrb[0].mxu0 %v348
    %v967 = vpop.f32.mrb[0].mxu0
    %v968 = vadd.f32 %v805, %v967
    %v969 = vpop.f32.mrb[0].mxu0
    %v970 = vadd.f32 %v807, %v969
    %v971 = vpop.f32.mrb[0].mxu0
    %v972 = vadd.f32 %v809, %v971
    %v973 = vpop.f32.mrb[0].mxu0
    %v974 = vadd.f32 %v811, %v973
    %975 = vmatprep.mubr.bf16.mxu0 %v353
    %976 = vmatmul.mubr.bf16.gmra.mrb[0].mxu0 %v352
    %v977 = vpop.f32.mrb[0].mxu0
    %v978 = vadd.f32 %v815, %v977
    %v979 = vpop.f32.mrb[0].mxu0
    %v980 = vadd.f32 %v817, %v979
    %v981 = vpop.f32.mrb[0].mxu0
    %v982 = vadd.f32 %v819, %v981
    %v983 = vpop.f32.mrb[0].mxu0
    %v984 = vadd.f32 %v821, %v983
    %985 = vmatprep.mubr.bf16.mxu0 %v357
    %986 = vmatmul.mubr.bf16.gmra.mrb[0].mxu0 %v356
    %v987 = vpop.f32.mrb[0].mxu0
    %v988 = vadd.f32 %v825, %v987
    %v989 = vpop.f32.mrb[0].mxu0
    %v990 = vadd.f32 %v827, %v989
    %v991 = vpop.f32.mrb[0].mxu0
    %v992 = vadd.f32 %v829, %v991
    %v993 = vpop.f32.mrb[0].mxu0
    %v994 = vadd.f32 %v831, %v993
    %995 = vmatprep.mubr.bf16.mxu0 %v361
    %996 = vmatmul.mubr.bf16.gmra.mrb[0].mxu0 %v360
    %v997 = vpop.f32.mrb[0].mxu0
    %v998 = vadd.f32 %v835, %v997
    %v999 = vpop.f32.mrb[0].mxu0
    %v1000 = vadd.f32 %v837, %v999
    %v1001 = vpop.f32.mrb[0].mxu0
    %v1002 = vadd.f32 %v839, %v1001
    %v1003 = vpop.f32.mrb[0].mxu0
    %v1004 = vadd.f32 %v841, %v1003
    %1005 = vmatprep.mubr.bf16.mxu0 %v365
    %1006 = vmatmul.mubr.bf16.gmra.mrb[0].mxu0 %v364
    %v1007 = vpop.f32.mrb[0].mxu0
    %v1008 = vadd.f32 %v845, %v1007
    %v1009 = vpop.f32.mrb[0].mxu0
    %v1010 = vadd.f32 %v847, %v1009
    %v1011 = vpop.f32.mrb[0].mxu0
    %v1012 = vadd.f32 %v849, %v1011
    %v1013 = vpop.f32.mrb[0].mxu0
    %v1014 = vadd.f32 %v851, %v1013
    %1015 = vmatprep.mubr.bf16.mxu0 %v369
    %1016 = vmatmul.mubr.bf16.gmra.mrb[0].mxu0 %v368
    %v1017 = vpop.f32.mrb[0].mxu0
    %v1018 = vadd.f32 %v855, %v1017
    %v1019 = vpop.f32.mrb[0].mxu0
    %v1020 = vadd.f32 %v857, %v1019
    %v1021 = vpop.f32.mrb[0].mxu0
    %v1022 = vadd.f32 %v859, %v1021
    %v1023 = vpop.f32.mrb[0].mxu0
    %v1024 = vadd.f32 %v861, %v1023
    %1025 = vmatprep.mubr.bf16.mxu0 %v373
    %1026 = vmatmul.mubr.bf16.gmra.mrb[0].mxu0 %v372
    %v1027 = vpop.f32.mrb[0].mxu0
    %v1028 = vadd.f32 %v865, %v1027
    %v1029 = vpop.f32.mrb[0].mxu0
    %v1030 = vadd.f32 %v867, %v1029
    %v1031 = vpop.f32.mrb[0].mxu0
    %v1032 = vadd.f32 %v869, %v1031
    %v1033 = vpop.f32.mrb[0].mxu0
    %v1034 = vadd.f32 %v871, %v1033
    %1035 = vmatprep.mubr.bf16.mxu0 %v377
    %1036 = vmatmul.mubr.bf16.gmra.mrb[0].mxu0 %v376
    %v1037 = vpop.f32.mrb[0].mxu0
    %v1038 = vadd.f32 %v875, %v1037
    %v1039 = vpop.f32.mrb[0].mxu0
    %v1040 = vadd.f32 %v877, %v1039
    %v1041 = vpop.f32.mrb[0].mxu0
    %v1042 = vadd.f32 %v879, %v1041
    %v1043 = vpop.f32.mrb[0].mxu0
    %v1044 = vadd.f32 %v881, %v1043
    %1045 = vmatprep.mubr.bf16.mxu0 %v381
    %1046 = vmatmul.mubr.bf16.gmra.mrb[0].mxu0 %v380
    %v1047 = vpop.f32.mrb[0].mxu0
    %v1048 = vadd.f32 %v885, %v1047
    %v1049 = vpop.f32.mrb[0].mxu0
    %v1050 = vadd.f32 %v887, %v1049
    %v1051 = vpop.f32.mrb[0].mxu0
    %v1052 = vadd.f32 %v889, %v1051
    %v1053 = vpop.f32.mrb[0].mxu0
    %v1054 = vadd.f32 %v891, %v1053
    %1055 = vmatprep.mubr.bf16.mxu0 %v385
    %1056 = vmatmul.mubr.bf16.gmra.mrb[0].mxu0 %v384
    %v1057 = vpop.f32.mrb[0].mxu0
    %v1058 = vadd.f32 %v895, %v1057
    %v1059 = vpop.f32.mrb[0].mxu0
    %v1060 = vadd.f32 %v897, %v1059
    %v1061 = vpop.f32.mrb[0].mxu0
    %v1062 = vadd.f32 %v899, %v1061
    %v1063 = vpop.f32.mrb[0].mxu0
    %v1064 = vadd.f32 %v901, %v1063
    %1065 = vmatprep.mubr.bf16.mxu0 %v389
    %1066 = vmatmul.mubr.bf16.gmra.mrb[0].mxu0 %v388
    %v1067 = vpop.f32.mrb[0].mxu0
    %v1068 = vadd.f32 %v905, %v1067
    %v1069 = vpop.f32.mrb[0].mxu0
    %v1070 = vadd.f32 %v907, %v1069
    %v1071 = vpop.f32.mrb[0].mxu0
    %v1072 = vadd.f32 %v909, %v1071
    %v1073 = vpop.f32.mrb[0].mxu0
    %v1074 = vadd.f32 %v911, %v1073
    %1075 = vmatprep.mubr.bf16.mxu0 %v393
    %1076 = vmatmul.mubr.bf16.gmra.mrb[0].mxu0 %v392
    %v1077 = vpop.f32.mrb[0].mxu0
    %v1078 = vadd.f32 %v915, %v1077
    %v1079 = vpop.f32.mrb[0].mxu0
    %v1080 = vadd.f32 %v917, %v1079
    %v1081 = vpop.f32.mrb[0].mxu0
    %v1082 = vadd.f32 %v919, %v1081
    %v1083 = vpop.f32.mrb[0].mxu0
    %v1084 = vadd.f32 %v921, %v1083
    %1085 = vmatprep.mubr.bf16.mxu0 %v397
    %1086 = vmatmul.mubr.bf16.gmra.mrb[0].mxu0 %v396
    %v1087 = vpop.f32.mrb[0].mxu0
    %v1088 = vadd.f32 %v925, %v1087
    %v1089 = vpop.f32.mrb[0].mxu0
    %v1090 = vadd.f32 %v927, %v1089
    %v1091 = vpop.f32.mrb[0].mxu0
    %v1092 = vadd.f32 %v929, %v1091
    %v1093 = vpop.f32.mrb[0].mxu0
    %v1094 = vadd.f32 %v931, %v1093
    %1095 = vdwg.mxu0
    %v1096 = vmax.f32 %v968, 0.0
    %v1097 = vmax.f32 %v970, 0.0
    %v1098 = vmax.f32 %v972, 0.0
    %v1099 = vmax.f32 %v974, 0.0
    %v1100 = vmax.f32 %v978, 0.0
    %v1101 = vmax.f32 %v980, 0.0
    %v1102 = vmax.f32 %v982, 0.0
    %v1103 = vmax.f32 %v984, 0.0
    %v1104 = vmax.f32 %v988, 0.0
    %v1105 = vmax.f32 %v990, 0.0
    %v1106 = vmax.f32 %v992, 0.0
    %v1107 = vmax.f32 %v994, 0.0
    %v1108 = vmax.f32 %v998, 0.0
    %v1109 = vmax.f32 %v1000, 0.0
    %v1110 = vmax.f32 %v1002, 0.0
    %v1111 = vmax.f32 %v1004, 0.0
    %v1112 = vmax.f32 %v1008, 0.0
    %v1113 = vmax.f32 %v1010, 0.0
    %v1114 = vmax.f32 %v1012, 0.0
    %v1115 = vmax.f32 %v1014, 0.0
    %v1116 = vmax.f32 %v1018, 0.0
    %v1117 = vmax.f32 %v1020, 0.0
    %v1118 = vmax.f32 %v1022, 0.0
    %v1119 = vmax.f32 %v1024, 0.0
    %v1120 = vmax.f32 %v1028, 0.0
    %v1121 = vmax.f32 %v1030, 0.0
    %v1122 = vmax.f32 %v1032, 0.0
    %v1123 = vmax.f32 %v1034, 0.0
    %v1124 = vmax.f32 %v1038, 0.0
    %v1125 = vmax.f32 %v1040, 0.0
    %v1126 = vmax.f32 %v1042, 0.0
    %v1127 = vmax.f32 %v1044, 0.0
    %v1128 = vmax.f32 %v1048, 0.0
    %v1129 = vmax.f32 %v1050, 0.0
    %v1130 = vmax.f32 %v1052, 0.0
    %v1131 = vmax.f32 %v1054, 0.0
    %v1132 = vmax.f32 %v1058, 0.0
    %v1133 = vmax.f32 %v1060, 0.0
    %v1134 = vmax.f32 %v1062, 0.0
    %v1135 = vmax.f32 %v1064, 0.0
    %v1136 = vmax.f32 %v1068, 0.0
    %v1137 = vmax.f32 %v1070, 0.0
    %v1138 = vmax.f32 %v1072, 0.0
    %v1139 = vmax.f32 %v1074, 0.0
    %v1140 = vmax.f32 %v1078, 0.0
    %v1141 = vmax.f32 %v1080, 0.0
    %v1142 = vmax.f32 %v1082, 0.0
    %v1143 = vmax.f32 %v1084, 0.0
    %v1144 = vmax.f32 %v1088, 0.0
    %v1145 = vmax.f32 %v1090, 0.0
    %v1146 = vmax.f32 %v1092, 0.0
    %v1147 = vmax.f32 %v1094, 0.0
    %v1148 = vpack.c.bf16 %v1098, %v1096
    %v1149 = vpack.c.bf16 %v1099, %v1097
    %v1150 = vpack.c.bf16 %v1102, %v1100
    %v1151 = vpack.c.bf16 %v1103, %v1101
    %v1152 = vpack.c.bf16 %v1106, %v1104
    %v1153 = vpack.c.bf16 %v1107, %v1105
    %v1154 = vpack.c.bf16 %v1110, %v1108
    %v1155 = vpack.c.bf16 %v1111, %v1109
    %v1156 = vpack.c.bf16 %v1114, %v1112
    %v1157 = vpack.c.bf16 %v1115, %v1113
    %v1158 = vpack.c.bf16 %v1118, %v1116
    %v1159 = vpack.c.bf16 %v1119, %v1117
    %v1160 = vpack.c.bf16 %v1122, %v1120
    %v1161 = vpack.c.bf16 %v1123, %v1121
    %v1162 = vpack.c.bf16 %v1126, %v1124
    %v1163 = vpack.c.bf16 %v1127, %v1125
    %v1164 = vpack.c.bf16 %v1130, %v1128
    %v1165 = vpack.c.bf16 %v1131, %v1129
    %v1166 = vpack.c.bf16 %v1134, %v1132
    %v1167 = vpack.c.bf16 %v1135, %v1133
    %v1168 = vpack.c.bf16 %v1138, %v1136
    %v1169 = vpack.c.bf16 %v1139, %v1137
    %v1170 = vpack.c.bf16 %v1142, %v1140
    %v1171 = vpack.c.bf16 %v1143, %v1141
    %v1172 = vpack.c.bf16 %v1146, %v1144
    %v1173 = vpack.c.bf16 %v1147, %v1145
    %v1174 = vld [vmem:[#allocation7] sm:$0xff]
    %v1175 = vld [vmem:[#allocation7 + $0x8] sm:$0xff]
    %v1176 = vld [vmem:[#allocation7 + $0x10] sm:$0xff]
    %v1177 = vld [vmem:[#allocation7 + $0x18] sm:$0xff]
    %v1178 = vld [vmem:[#allocation7 + $0x20] sm:$0xff]
    %v1179 = vld [vmem:[#allocation7 + $0x28] sm:$0xff]
    %v1180 = vld [vmem:[#allocation7 + $0x30] sm:$0xff]
    %v1181 = vld [vmem:[#allocation7 + $0x38] sm:$0xff]
    %v1182 = vld [vmem:[#allocation7 + $0x40] sm:$0xff]
    %v1183 = vld [vmem:[#allocation7 + $0x48] sm:$0xff]
    %v1184 = vld [vmem:[#allocation7 + $0x50] sm:$0xff]
    %v1185 = vld [vmem:[#allocation7 + $0x58] sm:$0xff]
    %v1186 = vld [vmem:[#allocation7 + $0x60] sm:$0xff]
    %v1187 = vld [vmem:[#allocation7 + $0x68] sm:$0xff]
    %v1188 = vld [vmem:[#allocation7 + $0x70] sm:$0xff]
    %v1189 = vld [vmem:[#allocation7 + $0x78] sm:$0xff]
    %v1190 = vld [vmem:[#allocation7 + $0x80] sm:$0xff]
    %v1191 = vld [vmem:[#allocation7 + $0x88] sm:$0xff]
    %v1192 = vld [vmem:[#allocation7 + $0x90] sm:$0xff]
    %v1193 = vld [vmem:[#allocation7 + $0x98] sm:$0xff]
    %v1194 = vld [vmem:[#allocation7 + $0xa0] sm:$0xff]
    %v1195 = vld [vmem:[#allocation7 + $0xa8] sm:$0xff]
    %v1196 = vld [vmem:[#allocation7 + $0xb0] sm:$0xff]
    %v1197 = vld [vmem:[#allocation7 + $0xb8] sm:$0xff]
    %v1198 = vld [vmem:[#allocation7 + $0xc0] sm:$0xff]
    %v1199 = vld [vmem:[#allocation7 + $0xc8] sm:$0xff]
    %v1200 = vld [vmem:[#allocation7 + $0xd0] sm:$0xff]
    %v1201 = vld [vmem:[#allocation7 + $0xd8] sm:$0xff]
    %v1202 = vld [vmem:[#allocation7 + $0xe0] sm:$0xff]
    %v1203 = vld [vmem:[#allocation7 + $0xe8] sm:$0xff]
    %v1204 = vld [vmem:[#allocation7 + $0xf0] sm:$0xff]
    %v1205 = vld [vmem:[#allocation7 + $0xf8] sm:$0xff]
    %v1206 = vld [vmem:[#allocation7 + $0x100] sm:$0xff]
    %v1207 = vld [vmem:[#allocation7 + $0x108] sm:$0xff]
    %v1208 = vld [vmem:[#allocation7 + $0x110] sm:$0xff]
    %v1209 = vld [vmem:[#allocation7 + $0x118] sm:$0xff]
    %v1210 = vld [vmem:[#allocation7 + $0x120] sm:$0xff]
    %v1211 = vld [vmem:[#allocation7 + $0x128] sm:$0xff]
    %v1212 = vld [vmem:[#allocation7 + $0x130] sm:$0xff]
    %v1213 = vld [vmem:[#allocation7 + $0x138] sm:$0xff]
    %v1214 = vld [vmem:[#allocation7 + $0x140] sm:$0xff]
    %v1215 = vld [vmem:[#allocation7 + $0x148] sm:$0xff]
    %v1216 = vld [vmem:[#allocation7 + $0x150] sm:$0xff]
    %v1217 = vld [vmem:[#allocation7 + $0x158] sm:$0xff]
    %v1218 = vld [vmem:[#allocation7 + $0x160] sm:$0xff]
    %v1219 = vld [vmem:[#allocation7 + $0x168] sm:$0xff]
    %v1220 = vld [vmem:[#allocation7 + $0x170] sm:$0xff]
    %v1221 = vld [vmem:[#allocation7 + $0x178] sm:$0xff]
    %v1222 = vld [vmem:[#allocation7 + $0x180] sm:$0xff]
    %v1223 = vld [vmem:[#allocation7 + $0x188] sm:$0xff]
    %v1224 = vld [vmem:[#allocation7 + $0x190] sm:$0xff]
    %v1225 = vld [vmem:[#allocation7 + $0x198] sm:$0xff]
    %v1226 = vld [vmem:[#allocation7 + $0x1a0] sm:$0xff]
    %v1227 = vld [vmem:[#allocation7 + $0x1a8] sm:$0xff]
    %v1228 = vld [vmem:[#allocation7 + $0x1b0] sm:$0xff]
    %v1229 = vld [vmem:[#allocation7 + $0x1b8] sm:$0xff]
    %v1230 = vld [vmem:[#allocation7 + $0x1c0] sm:$0xff]
    %v1231 = vld [vmem:[#allocation7 + $0x1c8] sm:$0xff]
    %v1232 = vld [vmem:[#allocation7 + $0x1d0] sm:$0xff]
    %v1233 = vld [vmem:[#allocation7 + $0x1d8] sm:$0xff]
    %v1234 = vld [vmem:[#allocation7 + $0x1e0] sm:$0xff]
    %v1235 = vld [vmem:[#allocation7 + $0x1e8] sm:$0xff]
    %v1236 = vld [vmem:[#allocation7 + $0x1f0] sm:$0xff]
    %v1237 = vld [vmem:[#allocation7 + $0x1f8] sm:$0xff]
    %v1238 = vld [vmem:[#allocation7 + $0x200] sm:$0xff]
    %v1239 = vld [vmem:[#allocation7 + $0x208] sm:$0xff]
    %v1240 = vld [vmem:[#allocation7 + $0x210] sm:$0xff]
    %v1241 = vld [vmem:[#allocation7 + $0x218] sm:$0xff]
    %v1242 = vld [vmem:[#allocation7 + $0x220] sm:$0xff]
    %v1243 = vld [vmem:[#allocation7 + $0x228] sm:$0xff]
    %v1244 = vld [vmem:[#allocation7 + $0x230] sm:$0xff]
    %v1245 = vld [vmem:[#allocation7 + $0x238] sm:$0xff]
    %v1246 = vld [vmem:[#allocation7 + $0x240] sm:$0xff]
    %v1247 = vld [vmem:[#allocation7 + $0x248] sm:$0xff]
    %v1248 = vld [vmem:[#allocation7 + $0x250] sm:$0xff]
    %v1249 = vld [vmem:[#allocation7 + $0x258] sm:$0xff]
    %v1250 = vld [vmem:[#allocation7 + $0x260] sm:$0xff]
    %v1251 = vld [vmem:[#allocation7 + $0x268] sm:$0xff]
    %v1252 = vld [vmem:[#allocation7 + $0x270] sm:$0xff]
    %v1253 = vld [vmem:[#allocation7 + $0x278] sm:$0xff]
    %v1254 = vld [vmem:[#allocation7 + $0x280] sm:$0xff]
    %v1255 = vld [vmem:[#allocation7 + $0x288] sm:$0xff]
    %v1256 = vld [vmem:[#allocation7 + $0x290] sm:$0xff]
    %v1257 = vld [vmem:[#allocation7 + $0x298] sm:$0xff]
    %v1258 = vld [vmem:[#allocation7 + $0x2a0] sm:$0xff]
    %v1259 = vld [vmem:[#allocation7 + $0x2a8] sm:$0xff]
    %v1260 = vld [vmem:[#allocation7 + $0x2b0] sm:$0xff]
    %v1261 = vld [vmem:[#allocation7 + $0x2b8] sm:$0xff]
    %v1262 = vld [vmem:[#allocation7 + $0x2c0] sm:$0xff]
    %v1263 = vld [vmem:[#allocation7 + $0x2c8] sm:$0xff]
    %v1264 = vld [vmem:[#allocation7 + $0x2d0] sm:$0xff]
    %v1265 = vld [vmem:[#allocation7 + $0x2d8] sm:$0xff]
    %v1266 = vld [vmem:[#allocation7 + $0x2e0] sm:$0xff]
    %v1267 = vld [vmem:[#allocation7 + $0x2e8] sm:$0xff]
    %v1268 = vld [vmem:[#allocation7 + $0x2f0] sm:$0xff]
    %v1269 = vld [vmem:[#allocation7 + $0x2f8] sm:$0xff]
    %v1270 = vld [vmem:[%s4] sm:$0x3f]
    %v1272 = vlaneseq
    %v1273 = vshrl.u32 %v1272, 7
    %v1274 = vsub.s32 0, %v1273
    %v1275 = vrot.slane %v1270, %v1274
    %v1276 = vlaneseq
    %v1277 = vshrl.u32 %v1276, 7
    %v1278 = vsub.s32 1, %v1277
    %v1279 = vrot.slane %v1270, %v1278
    %v1280 = vlaneseq
    %v1281 = vshrl.u32 %v1280, 7
    %v1282 = vsub.s32 2, %v1281
    %v1283 = vrot.slane %v1270, %v1282
    %v1284 = vlaneseq
    %v1285 = vshrl.u32 %v1284, 7
    %v1286 = vsub.s32 3, %v1285
    %v1287 = vrot.slane %v1270, %v1286
    %v1288 = vlaneseq
    %v1289 = vshrl.u32 %v1288, 7
    %v1290 = vsub.s32 4, %v1289
    %v1291 = vrot.slane %v1270, %v1290
    %v1292 = vlaneseq
    %v1293 = vshrl.u32 %v1292, 7
    %v1294 = vsub.s32 5, %v1293
    %v1295 = vrot.slane %v1270, %v1294
    %v1398 = vunpack.c.l.b16 %v1174
    %v1399 = vunpack.c.h.b16 %v1174
    %v1400 = vunpack.c.l.b16 %v1175
    %v1401 = vunpack.c.h.b16 %v1175
    %v1402 = vunpack.c.l.b16 %v1176
    %v1403 = vunpack.c.h.b16 %v1176
    %v1404 = vunpack.c.l.b16 %v1177
    %v1405 = vunpack.c.h.b16 %v1177
    %v1406 = vunpack.c.l.b16 %v1178
    %v1407 = vunpack.c.h.b16 %v1178
    %v1408 = vunpack.c.l.b16 %v1179
    %v1409 = vunpack.c.h.b16 %v1179
    %v1410 = vunpack.c.l.b16 %v1180
    %v1411 = vunpack.c.h.b16 %v1180
    %v1412 = vunpack.c.l.b16 %v1181
    %v1413 = vunpack.c.h.b16 %v1181
    %v1414 = vunpack.c.l.b16 %v1182
    %v1415 = vunpack.c.h.b16 %v1182
    %v1416 = vunpack.c.l.b16 %v1183
    %v1417 = vunpack.c.h.b16 %v1183
    %v1418 = vunpack.c.l.b16 %v1184
    %v1419 = vunpack.c.h.b16 %v1184
    %v1420 = vunpack.c.l.b16 %v1185
    %v1421 = vunpack.c.h.b16 %v1185
    %v1422 = vunpack.c.l.b16 %v1186
    %v1423 = vunpack.c.h.b16 %v1186
    %v1424 = vunpack.c.l.b16 %v1187
    %v1425 = vunpack.c.h.b16 %v1187
    %v1426 = vunpack.c.l.b16 %v1188
    %v1427 = vunpack.c.h.b16 %v1188
    %v1428 = vunpack.c.l.b16 %v1189
    %v1429 = vunpack.c.h.b16 %v1189
    %v1430 = vunpack.c.l.b16 %v1190
    %v1431 = vunpack.c.h.b16 %v1190
    %v1432 = vunpack.c.l.b16 %v1191
    %v1433 = vunpack.c.h.b16 %v1191
    %v1434 = vunpack.c.l.b16 %v1192
    %v1435 = vunpack.c.h.b16 %v1192
    %v1436 = vunpack.c.l.b16 %v1193
    %v1437 = vunpack.c.h.b16 %v1193
    %v1438 = vunpack.c.l.b16 %v1194
    %v1439 = vunpack.c.h.b16 %v1194
    %v1440 = vunpack.c.l.b16 %v1195
    %v1441 = vunpack.c.h.b16 %v1195
    %v1442 = vunpack.c.l.b16 %v1196
    %v1443 = vunpack.c.h.b16 %v1196
    %v1444 = vunpack.c.l.b16 %v1197
    %v1445 = vunpack.c.h.b16 %v1197
    %v1446 = vunpack.c.l.b16 %v1198
    %v1447 = vunpack.c.h.b16 %v1198
    %v1448 = vunpack.c.l.b16 %v1199
    %v1449 = vunpack.c.h.b16 %v1199
    %v1450 = vunpack.c.l.b16 %v1200
    %v1451 = vunpack.c.h.b16 %v1200
    %v1452 = vunpack.c.l.b16 %v1201
    %v1453 = vunpack.c.h.b16 %v1201
    %v1454 = vunpack.c.l.b16 %v1202
    %v1455 = vunpack.c.h.b16 %v1202
    %v1456 = vunpack.c.l.b16 %v1203
    %v1457 = vunpack.c.h.b16 %v1203
    %v1458 = vunpack.c.l.b16 %v1204
    %v1459 = vunpack.c.h.b16 %v1204
    %v1460 = vunpack.c.l.b16 %v1205
    %v1461 = vunpack.c.h.b16 %v1205
    %v1462 = vunpack.c.l.b16 %v1206
    %v1463 = vunpack.c.h.b16 %v1206
    %v1464 = vunpack.c.l.b16 %v1207
    %v1465 = vunpack.c.h.b16 %v1207
    %v1466 = vunpack.c.l.b16 %v1208
    %v1467 = vunpack.c.h.b16 %v1208
    %v1468 = vunpack.c.l.b16 %v1209
    %v1469 = vunpack.c.h.b16 %v1209
    %v1470 = vunpack.c.l.b16 %v1210
    %v1471 = vunpack.c.h.b16 %v1210
    %v1472 = vunpack.c.l.b16 %v1211
    %v1473 = vunpack.c.h.b16 %v1211
    %v1474 = vunpack.c.l.b16 %v1212
    %v1475 = vunpack.c.h.b16 %v1212
    %v1476 = vunpack.c.l.b16 %v1213
    %v1477 = vunpack.c.h.b16 %v1213
    %v1478 = vunpack.c.l.b16 %v1214
    %v1479 = vunpack.c.h.b16 %v1214
    %v1480 = vunpack.c.l.b16 %v1215
    %v1481 = vunpack.c.h.b16 %v1215
    %v1482 = vunpack.c.l.b16 %v1216
    %v1483 = vunpack.c.h.b16 %v1216
    %v1484 = vunpack.c.l.b16 %v1217
    %v1485 = vunpack.c.h.b16 %v1217
    %v1486 = vunpack.c.l.b16 %v1218
    %v1487 = vunpack.c.h.b16 %v1218
    %v1488 = vunpack.c.l.b16 %v1219
    %v1489 = vunpack.c.h.b16 %v1219
    %v1490 = vunpack.c.l.b16 %v1220
    %v1491 = vunpack.c.h.b16 %v1220
    %v1492 = vunpack.c.l.b16 %v1221
    %v1493 = vunpack.c.h.b16 %v1221
    %v1494 = vunpack.c.l.b16 %v1222
    %v1495 = vunpack.c.h.b16 %v1222
    %v1496 = vunpack.c.l.b16 %v1223
    %v1497 = vunpack.c.h.b16 %v1223
    %v1498 = vunpack.c.l.b16 %v1224
    %v1499 = vunpack.c.h.b16 %v1224
    %v1500 = vunpack.c.l.b16 %v1225
    %v1501 = vunpack.c.h.b16 %v1225
    %v1502 = vunpack.c.l.b16 %v1226
    %v1503 = vunpack.c.h.b16 %v1226
    %v1504 = vunpack.c.l.b16 %v1227
    %v1505 = vunpack.c.h.b16 %v1227
    %v1506 = vunpack.c.l.b16 %v1228
    %v1507 = vunpack.c.h.b16 %v1228
    %v1508 = vunpack.c.l.b16 %v1229
    %v1509 = vunpack.c.h.b16 %v1229
    %v1510 = vunpack.c.l.b16 %v1230
    %v1511 = vunpack.c.h.b16 %v1230
    %v1512 = vunpack.c.l.b16 %v1231
    %v1513 = vunpack.c.h.b16 %v1231
    %v1514 = vunpack.c.l.b16 %v1232
    %v1515 = vunpack.c.h.b16 %v1232
    %v1516 = vunpack.c.l.b16 %v1233
    %v1517 = vunpack.c.h.b16 %v1233
    %v1518 = vunpack.c.l.b16 %v1234
    %v1519 = vunpack.c.h.b16 %v1234
    %v1520 = vunpack.c.l.b16 %v1235
    %v1521 = vunpack.c.h.b16 %v1235
    %v1522 = vunpack.c.l.b16 %v1236
    %v1523 = vunpack.c.h.b16 %v1236
    %v1524 = vunpack.c.l.b16 %v1237
    %v1525 = vunpack.c.h.b16 %v1237
    %v1526 = vunpack.c.l.b16 %v1238
    %v1527 = vunpack.c.h.b16 %v1238
    %v1528 = vunpack.c.l.b16 %v1239
    %v1529 = vunpack.c.h.b16 %v1239
    %v1530 = vunpack.c.l.b16 %v1240
    %v1531 = vunpack.c.h.b16 %v1240
    %v1532 = vunpack.c.l.b16 %v1241
    %v1533 = vunpack.c.h.b16 %v1241
    %v1534 = vunpack.c.l.b16 %v1242
    %v1535 = vunpack.c.h.b16 %v1242
    %v1536 = vunpack.c.l.b16 %v1243
    %v1537 = vunpack.c.h.b16 %v1243
    %v1538 = vunpack.c.l.b16 %v1244
    %v1539 = vunpack.c.h.b16 %v1244
    %v1540 = vunpack.c.l.b16 %v1245
    %v1541 = vunpack.c.h.b16 %v1245
    %v1542 = vunpack.c.l.b16 %v1246
    %v1543 = vunpack.c.h.b16 %v1246
    %v1544 = vunpack.c.l.b16 %v1247
    %v1545 = vunpack.c.h.b16 %v1247
    %v1546 = vunpack.c.l.b16 %v1248
    %v1547 = vunpack.c.h.b16 %v1248
    %v1548 = vunpack.c.l.b16 %v1249
    %v1549 = vunpack.c.h.b16 %v1249
    %v1550 = vunpack.c.l.b16 %v1250
    %v1551 = vunpack.c.h.b16 %v1250
    %v1552 = vunpack.c.l.b16 %v1251
    %v1553 = vunpack.c.h.b16 %v1251
    %v1554 = vunpack.c.l.b16 %v1252
    %v1555 = vunpack.c.h.b16 %v1252
    %v1556 = vunpack.c.l.b16 %v1253
    %v1557 = vunpack.c.h.b16 %v1253
    %v1558 = vunpack.c.l.b16 %v1254
    %v1559 = vunpack.c.h.b16 %v1254
    %v1560 = vunpack.c.l.b16 %v1255
    %v1561 = vunpack.c.h.b16 %v1255
    %v1562 = vunpack.c.l.b16 %v1256
    %v1563 = vunpack.c.h.b16 %v1256
    %v1564 = vunpack.c.l.b16 %v1257
    %v1565 = vunpack.c.h.b16 %v1257
    %v1566 = vunpack.c.l.b16 %v1258
    %v1567 = vunpack.c.h.b16 %v1258
    %v1568 = vunpack.c.l.b16 %v1259
    %v1569 = vunpack.c.h.b16 %v1259
    %v1570 = vunpack.c.l.b16 %v1260
    %v1571 = vunpack.c.h.b16 %v1260
    %v1572 = vunpack.c.l.b16 %v1261
    %v1573 = vunpack.c.h.b16 %v1261
    %v1574 = vunpack.c.l.b16 %v1262
    %v1575 = vunpack.c.h.b16 %v1262
    %v1576 = vunpack.c.l.b16 %v1263
    %v1577 = vunpack.c.h.b16 %v1263
    %v1578 = vunpack.c.l.b16 %v1264
    %v1579 = vunpack.c.h.b16 %v1264
    %v1580 = vunpack.c.l.b16 %v1265
    %v1581 = vunpack.c.h.b16 %v1265
    %v1582 = vunpack.c.l.b16 %v1266
    %v1583 = vunpack.c.h.b16 %v1266
    %v1584 = vunpack.c.l.b16 %v1267
    %v1585 = vunpack.c.h.b16 %v1267
    %v1586 = vunpack.c.l.b16 %v1268
    %v1587 = vunpack.c.h.b16 %v1268
    %v1588 = vunpack.c.l.b16 %v1269
    %v1589 = vunpack.c.h.b16 %v1269
    %v1590 = vpack.c.b16 %v1404, %v1398
    %v1591 = vpack.c.b16 %v1405, %v1399
    %v1592 = vpack.c.b16 %v1406, %v1400
    %v1593 = vpack.c.b16 %v1407, %v1401
    %v1594 = vpack.c.b16 %v1408, %v1402
    %v1595 = vpack.c.b16 %v1409, %v1403
    %v1596 = vpack.c.b16 %v1416, %v1410
    %v1597 = vpack.c.b16 %v1417, %v1411
    %v1598 = vpack.c.b16 %v1418, %v1412
    %v1599 = vpack.c.b16 %v1419, %v1413
    %v1600 = vpack.c.b16 %v1420, %v1414
    %v1601 = vpack.c.b16 %v1421, %v1415
    %v1602 = vpack.c.b16 %v1428, %v1422
    %v1603 = vpack.c.b16 %v1429, %v1423
    %v1604 = vpack.c.b16 %v1430, %v1424
    %v1605 = vpack.c.b16 %v1431, %v1425
    %v1606 = vpack.c.b16 %v1432, %v1426
    %v1607 = vpack.c.b16 %v1433, %v1427
    %v1608 = vpack.c.b16 %v1440, %v1434
    %v1609 = vpack.c.b16 %v1441, %v1435
    %v1610 = vpack.c.b16 %v1442, %v1436
    %v1611 = vpack.c.b16 %v1443, %v1437
    %v1612 = vpack.c.b16 %v1444, %v1438
    %v1613 = vpack.c.b16 %v1445, %v1439
    %v1614 = vpack.c.b16 %v1452, %v1446
    %v1615 = vpack.c.b16 %v1453, %v1447
    %v1616 = vpack.c.b16 %v1454, %v1448
    %v1617 = vpack.c.b16 %v1455, %v1449
    %v1618 = vpack.c.b16 %v1456, %v1450
    %v1619 = vpack.c.b16 %v1457, %v1451
    %v1620 = vpack.c.b16 %v1464, %v1458
    %v1621 = vpack.c.b16 %v1465, %v1459
    %v1622 = vpack.c.b16 %v1466, %v1460
    %v1623 = vpack.c.b16 %v1467, %v1461
    %v1624 = vpack.c.b16 %v1468, %v1462
    %v1625 = vpack.c.b16 %v1469, %v1463
    %v1626 = vpack.c.b16 %v1476, %v1470
    %v1627 = vpack.c.b16 %v1477, %v1471
    %v1628 = vpack.c.b16 %v1478, %v1472
    %v1629 = vpack.c.b16 %v1479, %v1473
    %v1630 = vpack.c.b16 %v1480, %v1474
    %v1631 = vpack.c.b16 %v1481, %v1475
    %v1632 = vpack.c.b16 %v1488, %v1482
    %v1633 = vpack.c.b16 %v1489, %v1483
    %v1634 = vpack.c.b16 %v1490, %v1484
    %v1635 = vpack.c.b16 %v1491, %v1485
    %v1636 = vpack.c.b16 %v1492, %v1486
    %v1637 = vpack.c.b16 %v1493, %v1487
    %v1638 = vpack.c.b16 %v1500, %v1494
    %v1639 = vpack.c.b16 %v1501, %v1495
    %v1640 = vpack.c.b16 %v1502, %v1496
    %v1641 = vpack.c.b16 %v1503, %v1497
    %v1642 = vpack.c.b16 %v1504, %v1498
    %v1643 = vpack.c.b16 %v1505, %v1499
    %v1644 = vpack.c.b16 %v1512, %v1506
    %v1645 = vpack.c.b16 %v1513, %v1507
    %v1646 = vpack.c.b16 %v1514, %v1508
    %v1647 = vpack.c.b16 %v1515, %v1509
    %v1648 = vpack.c.b16 %v1516, %v1510
    %v1649 = vpack.c.b16 %v1517, %v1511
    %v1650 = vpack.c.b16 %v1524, %v1518
    %v1651 = vpack.c.b16 %v1525, %v1519
    %v1652 = vpack.c.b16 %v1526, %v1520
    %v1653 = vpack.c.b16 %v1527, %v1521
    %v1654 = vpack.c.b16 %v1528, %v1522
    %v1655 = vpack.c.b16 %v1529, %v1523
    %v1656 = vpack.c.b16 %v1536, %v1530
    %v1657 = vpack.c.b16 %v1537, %v1531
    %v1658 = vpack.c.b16 %v1538, %v1532
    %v1659 = vpack.c.b16 %v1539, %v1533
    %v1660 = vpack.c.b16 %v1540, %v1534
    %v1661 = vpack.c.b16 %v1541, %v1535
    %v1662 = vpack.c.b16 %v1548, %v1542
    %v1663 = vpack.c.b16 %v1549, %v1543
    %v1664 = vpack.c.b16 %v1550, %v1544
    %v1665 = vpack.c.b16 %v1551, %v1545
    %v1666 = vpack.c.b16 %v1552, %v1546
    %v1667 = vpack.c.b16 %v1553, %v1547
    %v1668 = vpack.c.b16 %v1560, %v1554
    %v1669 = vpack.c.b16 %v1561, %v1555
    %v1670 = vpack.c.b16 %v1562, %v1556
    %v1671 = vpack.c.b16 %v1563, %v1557
    %v1672 = vpack.c.b16 %v1564, %v1558
    %v1673 = vpack.c.b16 %v1565, %v1559
    %v1674 = vpack.c.b16 %v1572, %v1566
    %v1675 = vpack.c.b16 %v1573, %v1567
    %v1676 = vpack.c.b16 %v1574, %v1568
    %v1677 = vpack.c.b16 %v1575, %v1569
    %v1678 = vpack.c.b16 %v1576, %v1570
    %v1679 = vpack.c.b16 %v1577, %v1571
    %v1680 = vpack.c.b16 %v1584, %v1578
    %v1681 = vpack.c.b16 %v1585, %v1579
    %v1682 = vpack.c.b16 %v1586, %v1580
    %v1683 = vpack.c.b16 %v1587, %v1581
    %v1684 = vpack.c.b16 %v1588, %v1582
    %v1685 = vpack.c.b16 %v1589, %v1583
    %1782 = vmatprep.subr.bf16.mxu0 %v1591
    %1783 = vmatpush1.bf16.msra.mxu0 %v1590
    %1784 = vmatprep.subr.bf16.mxu0 %v1597
    %1785 = vmatpush1.bf16.msra.mxu0 %v1596
    %1786 = vmatprep.subr.bf16.mxu0 %v1603
    %1787 = vmatpush1.bf16.msra.mxu0 %v1602
    %1788 = vmatprep.subr.bf16.mxu0 %v1609
    %1789 = vmatpush1.bf16.msra.mxu0 %v1608
    %1790 = vmatprep.subr.bf16.mxu0 %v1615
    %1791 = vmatpush1.bf16.msra.mxu0 %v1614
    %1792 = vmatprep.subr.bf16.mxu0 %v1621
    %1793 = vmatpush1.bf16.msra.mxu0 %v1620
    %1794 = vmatprep.subr.bf16.mxu0 %v1627
    %1795 = vmatpush1.bf16.msra.mxu0 %v1626
    %1796 = vmatprep.subr.bf16.mxu0 %v1633
    %1797 = vmatpush1.bf16.msra.mxu0 %v1632
    %1798 = vmatprep.subr.bf16.mxu0 %v1639
    %1799 = vmatpush1.bf16.msra.mxu0 %v1638
    %1800 = vmatprep.subr.bf16.mxu0 %v1645
    %1801 = vmatpush1.bf16.msra.mxu0 %v1644
    %1802 = vmatprep.subr.bf16.mxu0 %v1651
    %1803 = vmatpush1.bf16.msra.mxu0 %v1650
    %1804 = vmatprep.subr.bf16.mxu0 %v1657
    %1805 = vmatpush1.bf16.msra.mxu0 %v1656
    %1806 = vmatprep.subr.bf16.mxu0 %v1663
    %1807 = vmatpush1.bf16.msra.mxu0 %v1662
    %1808 = vmatprep.subr.bf16.mxu0 %v1669
    %1809 = vmatpush1.bf16.msra.mxu0 %v1668
    %1810 = vmatprep.subr.bf16.mxu0 %v1675
    %1811 = vmatpush1.bf16.msra.mxu0 %v1674
    %1812 = vmatprep.subr.bf16.mxu0 %v1681
    %1813 = vmatpush1.bf16.msra.mxu0 %v1680
    %1814 = vmatprep.mubr.bf16.mxu0 %v1149
    %1815 = vmatmul.mubr.bf16.gmra.mrb[0].mxu0 %v1148
    %v1816 = vpop.f32.mrb[0].mxu0
    %v1817 = vadd.f32 %v1275, %v1816
    %v1818 = vpop.f32.mrb[0].mxu0
    %v1819 = vadd.f32 %v1279, %v1818
    %v1820 = vpop.f32.mrb[0].mxu0
    %v1821 = vadd.f32 %v1275, %v1820
    %v1822 = vpop.f32.mrb[0].mxu0
    %v1823 = vadd.f32 %v1279, %v1822
    %1824 = vmatprep.mubr.bf16.mxu0 %v1151
    %1825 = vmatmul.mubr.bf16.gmra.mrb[0].mxu0 %v1150
    %v1826 = vpop.f32.mrb[0].mxu0
    %v1827 = vadd.f32 %v1275, %v1826
    %v1828 = vpop.f32.mrb[0].mxu0
    %v1829 = vadd.f32 %v1279, %v1828
    %v1830 = vpop.f32.mrb[0].mxu0
    %v1831 = vadd.f32 %v1275, %v1830
    %v1832 = vpop.f32.mrb[0].mxu0
    %v1833 = vadd.f32 %v1279, %v1832
    %1834 = vmatprep.mubr.bf16.mxu0 %v1153
    %1835 = vmatmul.mubr.bf16.gmra.mrb[0].mxu0 %v1152
    %v1836 = vpop.f32.mrb[0].mxu0
    %v1837 = vadd.f32 %v1275, %v1836
    %v1838 = vpop.f32.mrb[0].mxu0
    %v1839 = vadd.f32 %v1279, %v1838
    %v1840 = vpop.f32.mrb[0].mxu0
    %v1841 = vadd.f32 %v1275, %v1840
    %v1842 = vpop.f32.mrb[0].mxu0
    %v1843 = vadd.f32 %v1279, %v1842
    %1844 = vmatprep.mubr.bf16.mxu0 %v1155
    %1845 = vmatmul.mubr.bf16.gmra.mrb[0].mxu0 %v1154
    %v1846 = vpop.f32.mrb[0].mxu0
    %v1847 = vadd.f32 %v1275, %v1846
    %v1848 = vpop.f32.mrb[0].mxu0
    %v1849 = vadd.f32 %v1279, %v1848
    %v1850 = vpop.f32.mrb[0].mxu0
    %v1851 = vadd.f32 %v1275, %v1850
    %v1852 = vpop.f32.mrb[0].mxu0
    %v1853 = vadd.f32 %v1279, %v1852
    %1854 = vmatprep.mubr.bf16.mxu0 %v1157
    %1855 = vmatmul.mubr.bf16.gmra.mrb[0].mxu0 %v1156
    %v1856 = vpop.f32.mrb[0].mxu0
    %v1857 = vadd.f32 %v1275, %v1856
    %v1858 = vpop.f32.mrb[0].mxu0
    %v1859 = vadd.f32 %v1279, %v1858
    %v1860 = vpop.f32.mrb[0].mxu0
    %v1861 = vadd.f32 %v1275, %v1860
    %v1862 = vpop.f32.mrb[0].mxu0
    %v1863 = vadd.f32 %v1279, %v1862
    %1864 = vmatprep.mubr.bf16.mxu0 %v1159
    %1865 = vmatmul.mubr.bf16.gmra.mrb[0].mxu0 %v1158
    %v1866 = vpop.f32.mrb[0].mxu0
    %v1867 = vadd.f32 %v1275, %v1866
    %v1868 = vpop.f32.mrb[0].mxu0
    %v1869 = vadd.f32 %v1279, %v1868
    %v1870 = vpop.f32.mrb[0].mxu0
    %v1871 = vadd.f32 %v1275, %v1870
    %v1872 = vpop.f32.mrb[0].mxu0
    %v1873 = vadd.f32 %v1279, %v1872
    %1874 = vmatprep.mubr.bf16.mxu0 %v1161
    %1875 = vmatmul.mubr.bf16.gmra.mrb[0].mxu0 %v1160
    %v1876 = vpop.f32.mrb[0].mxu0
    %v1877 = vadd.f32 %v1275, %v1876
    %v1878 = vpop.f32.mrb[0].mxu0
    %v1879 = vadd.f32 %v1279, %v1878
    %v1880 = vpop.f32.mrb[0].mxu0
    %v1881 = vadd.f32 %v1275, %v1880
    %v1882 = vpop.f32.mrb[0].mxu0
    %v1883 = vadd.f32 %v1279, %v1882
    %1884 = vmatprep.mubr.bf16.mxu0 %v1163
    %1885 = vmatmul.mubr.bf16.gmra.mrb[0].mxu0 %v1162
    %v1886 = vpop.f32.mrb[0].mxu0
    %v1887 = vadd.f32 %v1275, %v1886
    %v1888 = vpop.f32.mrb[0].mxu0
    %v1889 = vadd.f32 %v1279, %v1888
    %v1890 = vpop.f32.mrb[0].mxu0
    %v1891 = vadd.f32 %v1275, %v1890
    %v1892 = vpop.f32.mrb[0].mxu0
    %v1893 = vadd.f32 %v1279, %v1892
    %1894 = vmatprep.mubr.bf16.mxu0 %v1165
    %1895 = vmatmul.mubr.bf16.gmra.mrb[0].mxu0 %v1164
    %v1896 = vpop.f32.mrb[0].mxu0
    %v1897 = vadd.f32 %v1275, %v1896
    %v1898 = vpop.f32.mrb[0].mxu0
    %v1899 = vadd.f32 %v1279, %v1898
    %v1900 = vpop.f32.mrb[0].mxu0
    %v1901 = vadd.f32 %v1275, %v1900
    %v1902 = vpop.f32.mrb[0].mxu0
    %v1903 = vadd.f32 %v1279, %v1902
    %1904 = vmatprep.mubr.bf16.mxu0 %v1167
    %1905 = vmatmul.mubr.bf16.gmra.mrb[0].mxu0 %v1166
    %v1906 = vpop.f32.mrb[0].mxu0
    %v1907 = vadd.f32 %v1275, %v1906
    %v1908 = vpop.f32.mrb[0].mxu0
    %v1909 = vadd.f32 %v1279, %v1908
    %v1910 = vpop.f32.mrb[0].mxu0
    %v1911 = vadd.f32 %v1275, %v1910
    %v1912 = vpop.f32.mrb[0].mxu0
    %v1913 = vadd.f32 %v1279, %v1912
    %1914 = vmatprep.mubr.bf16.mxu0 %v1169
    %1915 = vmatmul.mubr.bf16.gmra.mrb[0].mxu0 %v1168
    %v1916 = vpop.f32.mrb[0].mxu0
    %v1917 = vadd.f32 %v1275, %v1916
    %v1918 = vpop.f32.mrb[0].mxu0
    %v1919 = vadd.f32 %v1279, %v1918
    %v1920 = vpop.f32.mrb[0].mxu0
    %v1921 = vadd.f32 %v1275, %v1920
    %v1922 = vpop.f32.mrb[0].mxu0
    %v1923 = vadd.f32 %v1279, %v1922
    %1924 = vmatprep.mubr.bf16.mxu0 %v1171
    %1925 = vmatmul.mubr.bf16.gmra.mrb[0].mxu0 %v1170
    %v1926 = vpop.f32.mrb[0].mxu0
    %v1927 = vadd.f32 %v1275, %v1926
    %v1928 = vpop.f32.mrb[0].mxu0
    %v1929 = vadd.f32 %v1279, %v1928
    %v1930 = vpop.f32.mrb[0].mxu0
    %v1931 = vadd.f32 %v1275, %v1930
    %v1932 = vpop.f32.mrb[0].mxu0
    %v1933 = vadd.f32 %v1279, %v1932
    %1934 = vmatprep.mubr.bf16.mxu0 %v1173
    %1935 = vmatmul.mubr.bf16.gmra.mrb[0].mxu0 %v1172
    %v1936 = vpop.f32.mrb[0].mxu0
    %v1937 = vadd.f32 %v1275, %v1936
    %v1938 = vpop.f32.mrb[0].mxu0
    %v1939 = vadd.f32 %v1279, %v1938
    %v1940 = vpop.f32.mrb[0].mxu0
    %v1941 = vadd.f32 %v1275, %v1940
    %v1942 = vpop.f32.mrb[0].mxu0
    %v1943 = vadd.f32 %v1279, %v1942
    %1944 = vdwg.mxu0
    %1945 = vmatprep.subr.bf16.mxu0 %v1593
    %1946 = vmatpush1.bf16.msra.mxu0 %v1592
    %1947 = vmatprep.subr.bf16.mxu0 %v1599
    %1948 = vmatpush1.bf16.msra.mxu0 %v1598
    %1949 = vmatprep.subr.bf16.mxu0 %v1605
    %1950 = vmatpush1.bf16.msra.mxu0 %v1604
    %1951 = vmatprep.subr.bf16.mxu0 %v1611
    %1952 = vmatpush1.bf16.msra.mxu0 %v1610
    %1953 = vmatprep.subr.bf16.mxu0 %v1617
    %1954 = vmatpush1.bf16.msra.mxu0 %v1616
    %1955 = vmatprep.subr.bf16.mxu0 %v1623
    %1956 = vmatpush1.bf16.msra.mxu0 %v1622
    %1957 = vmatprep.subr.bf16.mxu0 %v1629
    %1958 = vmatpush1.bf16.msra.mxu0 %v1628
    %1959 = vmatprep.subr.bf16.mxu0 %v1635
    %1960 = vmatpush1.bf16.msra.mxu0 %v1634
    %1961 = vmatprep.subr.bf16.mxu0 %v1641
    %1962 = vmatpush1.bf16.msra.mxu0 %v1640
    %1963 = vmatprep.subr.bf16.mxu0 %v1647
    %1964 = vmatpush1.bf16.msra.mxu0 %v1646
    %1965 = vmatprep.subr.bf16.mxu0 %v1653
    %1966 = vmatpush1.bf16.msra.mxu0 %v1652
    %1967 = vmatprep.subr.bf16.mxu0 %v1659
    %1968 = vmatpush1.bf16.msra.mxu0 %v1658
    %1969 = vmatprep.subr.bf16.mxu0 %v1665
    %1970 = vmatpush1.bf16.msra.mxu0 %v1664
    %1971 = vmatprep.subr.bf16.mxu0 %v1671
    %1972 = vmatpush1.bf16.msra.mxu0 %v1670
    %1973 = vmatprep.subr.bf16.mxu0 %v1677
    %1974 = vmatpush1.bf16.msra.mxu0 %v1676
    %1975 = vmatprep.subr.bf16.mxu0 %v1683
    %1976 = vmatpush1.bf16.msra.mxu0 %v1682
    %1977 = vmatprep.mubr.bf16.mxu0 %v1149
    %1978 = vmatmul.mubr.bf16.gmra.mrb[0].mxu0 %v1148
    %v1979 = vpop.f32.mrb[0].mxu0
    %v1980 = vadd.f32 %v1283, %v1979
    %v1981 = vpop.f32.mrb[0].mxu0
    %v1982 = vadd.f32 %v1287, %v1981
    %v1983 = vpop.f32.mrb[0].mxu0
    %v1984 = vadd.f32 %v1283, %v1983
    %v1985 = vpop.f32.mrb[0].mxu0
    %v1986 = vadd.f32 %v1287, %v1985
    %1987 = vmatprep.mubr.bf16.mxu0 %v1151
    %1988 = vmatmul.mubr.bf16.gmra.mrb[0].mxu0 %v1150
    %v1989 = vpop.f32.mrb[0].mxu0
    %v1990 = vadd.f32 %v1283, %v1989
    %v1991 = vpop.f32.mrb[0].mxu0
    %v1992 = vadd.f32 %v1287, %v1991
    %v1993 = vpop.f32.mrb[0].mxu0
    %v1994 = vadd.f32 %v1283, %v1993
    %v1995 = vpop.f32.mrb[0].mxu0
    %v1996 = vadd.f32 %v1287, %v1995
    %1997 = vmatprep.mubr.bf16.mxu0 %v1153
    %1998 = vmatmul.mubr.bf16.gmra.mrb[0].mxu0 %v1152
    %v1999 = vpop.f32.mrb[0].mxu0
    %v2000 = vadd.f32 %v1283, %v1999
    %v2001 = vpop.f32.mrb[0].mxu0
    %v2002 = vadd.f32 %v1287, %v2001
    %v2003 = vpop.f32.mrb[0].mxu0
    %v2004 = vadd.f32 %v1283, %v2003
    %v2005 = vpop.f32.mrb[0].mxu0
    %v2006 = vadd.f32 %v1287, %v2005
    %2007 = vmatprep.mubr.bf16.mxu0 %v1155
    %2008 = vmatmul.mubr.bf16.gmra.mrb[0].mxu0 %v1154
    %v2009 = vpop.f32.mrb[0].mxu0
    %v2010 = vadd.f32 %v1283, %v2009
    %v2011 = vpop.f32.mrb[0].mxu0
    %v2012 = vadd.f32 %v1287, %v2011
    %v2013 = vpop.f32.mrb[0].mxu0
    %v2014 = vadd.f32 %v1283, %v2013
    %v2015 = vpop.f32.mrb[0].mxu0
    %v2016 = vadd.f32 %v1287, %v2015
    %2017 = vmatprep.mubr.bf16.mxu0 %v1157
    %2018 = vmatmul.mubr.bf16.gmra.mrb[0].mxu0 %v1156
    %v2019 = vpop.f32.mrb[0].mxu0
    %v2020 = vadd.f32 %v1283, %v2019
    %v2021 = vpop.f32.mrb[0].mxu0
    %v2022 = vadd.f32 %v1287, %v2021
    %v2023 = vpop.f32.mrb[0].mxu0
    %v2024 = vadd.f32 %v1283, %v2023
    %v2025 = vpop.f32.mrb[0].mxu0
    %v2026 = vadd.f32 %v1287, %v2025
    %2027 = vmatprep.mubr.bf16.mxu0 %v1159
    %2028 = vmatmul.mubr.bf16.gmra.mrb[0].mxu0 %v1158
    %v2029 = vpop.f32.mrb[0].mxu0
    %v2030 = vadd.f32 %v1283, %v2029
    %v2031 = vpop.f32.mrb[0].mxu0
    %v2032 = vadd.f32 %v1287, %v2031
    %v2033 = vpop.f32.mrb[0].mxu0
    %v2034 = vadd.f32 %v1283, %v2033
    %v2035 = vpop.f32.mrb[0].mxu0
    %v2036 = vadd.f32 %v1287, %v2035
    %2037 = vmatprep.mubr.bf16.mxu0 %v1161
    %2038 = vmatmul.mubr.bf16.gmra.mrb[0].mxu0 %v1160
    %v2039 = vpop.f32.mrb[0].mxu0
    %v2040 = vadd.f32 %v1283, %v2039
    %v2041 = vpop.f32.mrb[0].mxu0
    %v2042 = vadd.f32 %v1287, %v2041
    %v2043 = vpop.f32.mrb[0].mxu0
    %v2044 = vadd.f32 %v1283, %v2043
    %v2045 = vpop.f32.mrb[0].mxu0
    %v2046 = vadd.f32 %v1287, %v2045
    %2047 = vmatprep.mubr.bf16.mxu0 %v1163
    %2048 = vmatmul.mubr.bf16.gmra.mrb[0].mxu0 %v1162
    %v2049 = vpop.f32.mrb[0].mxu0
    %v2050 = vadd.f32 %v1283, %v2049
    %v2051 = vpop.f32.mrb[0].mxu0
    %v2052 = vadd.f32 %v1287, %v2051
    %v2053 = vpop.f32.mrb[0].mxu0
    %v2054 = vadd.f32 %v1283, %v2053
    %v2055 = vpop.f32.mrb[0].mxu0
    %v2056 = vadd.f32 %v1287, %v2055
    %2057 = vmatprep.mubr.bf16.mxu0 %v1165
    %2058 = vmatmul.mubr.bf16.gmra.mrb[0].mxu0 %v1164
    %v2059 = vpop.f32.mrb[0].mxu0
    %v2060 = vadd.f32 %v1283, %v2059
    %v2061 = vpop.f32.mrb[0].mxu0
    %v2062 = vadd.f32 %v1287, %v2061
    %v2063 = vpop.f32.mrb[0].mxu0
    %v2064 = vadd.f32 %v1283, %v2063
    %v2065 = vpop.f32.mrb[0].mxu0
    %v2066 = vadd.f32 %v1287, %v2065
    %2067 = vmatprep.mubr.bf16.mxu0 %v1167
    %2068 = vmatmul.mubr.bf16.gmra.mrb[0].mxu0 %v1166
    %v2069 = vpop.f32.mrb[0].mxu0
    %v2070 = vadd.f32 %v1283, %v2069
    %v2071 = vpop.f32.mrb[0].mxu0
    %v2072 = vadd.f32 %v1287, %v2071
    %v2073 = vpop.f32.mrb[0].mxu0
    %v2074 = vadd.f32 %v1283, %v2073
    %v2075 = vpop.f32.mrb[0].mxu0
    %v2076 = vadd.f32 %v1287, %v2075
    %2077 = vmatprep.mubr.bf16.mxu0 %v1169
    %2078 = vmatmul.mubr.bf16.gmra.mrb[0].mxu0 %v1168
    %v2079 = vpop.f32.mrb[0].mxu0
    %v2080 = vadd.f32 %v1283, %v2079
    %v2081 = vpop.f32.mrb[0].mxu0
    %v2082 = vadd.f32 %v1287, %v2081
    %v2083 = vpop.f32.mrb[0].mxu0
    %v2084 = vadd.f32 %v1283, %v2083
    %v2085 = vpop.f32.mrb[0].mxu0
    %v2086 = vadd.f32 %v1287, %v2085
    %2087 = vmatprep.mubr.bf16.mxu0 %v1171
    %2088 = vmatmul.mubr.bf16.gmra.mrb[0].mxu0 %v1170
    %v2089 = vpop.f32.mrb[0].mxu0
    %v2090 = vadd.f32 %v1283, %v2089
    %v2091 = vpop.f32.mrb[0].mxu0
    %v2092 = vadd.f32 %v1287, %v2091
    %v2093 = vpop.f32.mrb[0].mxu0
    %v2094 = vadd.f32 %v1283, %v2093
    %v2095 = vpop.f32.mrb[0].mxu0
    %v2096 = vadd.f32 %v1287, %v2095
    %2097 = vmatprep.mubr.bf16.mxu0 %v1173
    %2098 = vmatmul.mubr.bf16.gmra.mrb[0].mxu0 %v1172
    %v2099 = vpop.f32.mrb[0].mxu0
    %v2100 = vadd.f32 %v1283, %v2099
    %v2101 = vpop.f32.mrb[0].mxu0
    %v2102 = vadd.f32 %v1287, %v2101
    %v2103 = vpop.f32.mrb[0].mxu0
    %v2104 = vadd.f32 %v1283, %v2103
    %v2105 = vpop.f32.mrb[0].mxu0
    %v2106 = vadd.f32 %v1287, %v2105
    %2107 = vdwg.mxu0
    %2108 = vmatprep.subr.bf16.mxu0 %v1595
    %2109 = vmatpush1.bf16.msra.mxu0 %v1594
    %2110 = vmatprep.subr.bf16.mxu0 %v1601
    %2111 = vmatpush1.bf16.msra.mxu0 %v1600
    %2112 = vmatprep.subr.bf16.mxu0 %v1607
    %2113 = vmatpush1.bf16.msra.mxu0 %v1606
    %2114 = vmatprep.subr.bf16.mxu0 %v1613
    %2115 = vmatpush1.bf16.msra.mxu0 %v1612
    %2116 = vmatprep.subr.bf16.mxu0 %v1619
    %2117 = vmatpush1.bf16.msra.mxu0 %v1618
    %2118 = vmatprep.subr.bf16.mxu0 %v1625
    %2119 = vmatpush1.bf16.msra.mxu0 %v1624
    %2120 = vmatprep.subr.bf16.mxu0 %v1631
    %2121 = vmatpush1.bf16.msra.mxu0 %v1630
    %2122 = vmatprep.subr.bf16.mxu0 %v1637
    %2123 = vmatpush1.bf16.msra.mxu0 %v1636
    %2124 = vmatprep.subr.bf16.mxu0 %v1643
    %2125 = vmatpush1.bf16.msra.mxu0 %v1642
    %2126 = vmatprep.subr.bf16.mxu0 %v1649
    %2127 = vmatpush1.bf16.msra.mxu0 %v1648
    %2128 = vmatprep.subr.bf16.mxu0 %v1655
    %2129 = vmatpush1.bf16.msra.mxu0 %v1654
    %2130 = vmatprep.subr.bf16.mxu0 %v1661
    %2131 = vmatpush1.bf16.msra.mxu0 %v1660
    %2132 = vmatprep.subr.bf16.mxu0 %v1667
    %2133 = vmatpush1.bf16.msra.mxu0 %v1666
    %2134 = vmatprep.subr.bf16.mxu0 %v1673
    %2135 = vmatpush1.bf16.msra.mxu0 %v1672
    %2136 = vmatprep.subr.bf16.mxu0 %v1679
    %2137 = vmatpush1.bf16.msra.mxu0 %v1678
    %2138 = vmatprep.subr.bf16.mxu0 %v1685
    %2139 = vmatpush1.bf16.msra.mxu0 %v1684
    %2140 = vmatprep.mubr.bf16.mxu0 %v1149
    %2141 = vmatmul.mubr.bf16.gmra.mrb[0].mxu0 %v1148
    %v2142 = vpop.f32.mrb[0].mxu0
    %v2143 = vadd.f32 %v1291, %v2142
    %v2144 = vpop.f32.mrb[0].mxu0
    %v2145 = vadd.f32 %v1295, %v2144
    %v2146 = vpop.f32.mrb[0].mxu0
    %v2147 = vadd.f32 %v1291, %v2146
    %v2148 = vpop.f32.mrb[0].mxu0
    %v2149 = vadd.f32 %v1295, %v2148
    %2150 = vmatprep.mubr.bf16.mxu0 %v1151
    %2151 = vmatmul.mubr.bf16.gmra.mrb[0].mxu0 %v1150
    %v2152 = vpop.f32.mrb[0].mxu0
    %v2153 = vadd.f32 %v1291, %v2152
    %v2154 = vpop.f32.mrb[0].mxu0
    %v2155 = vadd.f32 %v1295, %v2154
    %v2156 = vpop.f32.mrb[0].mxu0
    %v2157 = vadd.f32 %v1291, %v2156
    %v2158 = vpop.f32.mrb[0].mxu0
    %v2159 = vadd.f32 %v1295, %v2158
    %2160 = vmatprep.mubr.bf16.mxu0 %v1153
    %2161 = vmatmul.mubr.bf16.gmra.mrb[0].mxu0 %v1152
    %v2162 = vpop.f32.mrb[0].mxu0
    %v2163 = vadd.f32 %v1291, %v2162
    %v2164 = vpop.f32.mrb[0].mxu0
    %v2165 = vadd.f32 %v1295, %v2164
    %v2166 = vpop.f32.mrb[0].mxu0
    %v2167 = vadd.f32 %v1291, %v2166
    %v2168 = vpop.f32.mrb[0].mxu0
    %v2169 = vadd.f32 %v1295, %v2168
    %2170 = vmatprep.mubr.bf16.mxu0 %v1155
    %2171 = vmatmul.mubr.bf16.gmra.mrb[0].mxu0 %v1154
    %v2172 = vpop.f32.mrb[0].mxu0
    %v2173 = vadd.f32 %v1291, %v2172
    %v2174 = vpop.f32.mrb[0].mxu0
    %v2175 = vadd.f32 %v1295, %v2174
    %v2176 = vpop.f32.mrb[0].mxu0
    %v2177 = vadd.f32 %v1291, %v2176
    %v2178 = vpop.f32.mrb[0].mxu0
    %v2179 = vadd.f32 %v1295, %v2178
    %2180 = vmatprep.mubr.bf16.mxu0 %v1157
    %2181 = vmatmul.mubr.bf16.gmra.mrb[0].mxu0 %v1156
    %v2182 = vpop.f32.mrb[0].mxu0
    %v2183 = vadd.f32 %v1291, %v2182
    %v2184 = vpop.f32.mrb[0].mxu0
    %v2185 = vadd.f32 %v1295, %v2184
    %v2186 = vpop.f32.mrb[0].mxu0
    %v2187 = vadd.f32 %v1291, %v2186
    %v2188 = vpop.f32.mrb[0].mxu0
    %v2189 = vadd.f32 %v1295, %v2188
    %2190 = vmatprep.mubr.bf16.mxu0 %v1159
    %2191 = vmatmul.mubr.bf16.gmra.mrb[0].mxu0 %v1158
    %v2192 = vpop.f32.mrb[0].mxu0
    %v2193 = vadd.f32 %v1291, %v2192
    %v2194 = vpop.f32.mrb[0].mxu0
    %v2195 = vadd.f32 %v1295, %v2194
    %v2196 = vpop.f32.mrb[0].mxu0
    %v2197 = vadd.f32 %v1291, %v2196
    %v2198 = vpop.f32.mrb[0].mxu0
    %v2199 = vadd.f32 %v1295, %v2198
    %2200 = vmatprep.mubr.bf16.mxu0 %v1161
    %2201 = vmatmul.mubr.bf16.gmra.mrb[0].mxu0 %v1160
    %v2202 = vpop.f32.mrb[0].mxu0
    %v2203 = vadd.f32 %v1291, %v2202
    %v2204 = vpop.f32.mrb[0].mxu0
    %v2205 = vadd.f32 %v1295, %v2204
    %v2206 = vpop.f32.mrb[0].mxu0
    %v2207 = vadd.f32 %v1291, %v2206
    %v2208 = vpop.f32.mrb[0].mxu0
    %v2209 = vadd.f32 %v1295, %v2208
    %2210 = vmatprep.mubr.bf16.mxu0 %v1163
    %2211 = vmatmul.mubr.bf16.gmra.mrb[0].mxu0 %v1162
    %v2212 = vpop.f32.mrb[0].mxu0
    %v2213 = vadd.f32 %v1291, %v2212
    %v2214 = vpop.f32.mrb[0].mxu0
    %v2215 = vadd.f32 %v1295, %v2214
    %v2216 = vpop.f32.mrb[0].mxu0
    %v2217 = vadd.f32 %v1291, %v2216
    %v2218 = vpop.f32.mrb[0].mxu0
    %v2219 = vadd.f32 %v1295, %v2218
    %2220 = vmatprep.mubr.bf16.mxu0 %v1165
    %2221 = vmatmul.mubr.bf16.gmra.mrb[0].mxu0 %v1164
    %v2222 = vpop.f32.mrb[0].mxu0
    %v2223 = vadd.f32 %v1291, %v2222
    %v2224 = vpop.f32.mrb[0].mxu0
    %v2225 = vadd.f32 %v1295, %v2224
    %v2226 = vpop.f32.mrb[0].mxu0
    %v2227 = vadd.f32 %v1291, %v2226
    %v2228 = vpop.f32.mrb[0].mxu0
    %v2229 = vadd.f32 %v1295, %v2228
    %2230 = vmatprep.mubr.bf16.mxu0 %v1167
    %2231 = vmatmul.mubr.bf16.gmra.mrb[0].mxu0 %v1166
    %v2232 = vpop.f32.mrb[0].mxu0
    %v2233 = vadd.f32 %v1291, %v2232
    %v2234 = vpop.f32.mrb[0].mxu0
    %v2235 = vadd.f32 %v1295, %v2234
    %v2236 = vpop.f32.mrb[0].mxu0
    %v2237 = vadd.f32 %v1291, %v2236
    %v2238 = vpop.f32.mrb[0].mxu0
    %v2239 = vadd.f32 %v1295, %v2238
    %2240 = vmatprep.mubr.bf16.mxu0 %v1169
    %2241 = vmatmul.mubr.bf16.gmra.mrb[0].mxu0 %v1168
    %v2242 = vpop.f32.mrb[0].mxu0
    %v2243 = vadd.f32 %v1291, %v2242
    %v2244 = vpop.f32.mrb[0].mxu0
    %v2245 = vadd.f32 %v1295, %v2244
    %v2246 = vpop.f32.mrb[0].mxu0
    %v2247 = vadd.f32 %v1291, %v2246
    %v2248 = vpop.f32.mrb[0].mxu0
    %v2249 = vadd.f32 %v1295, %v2248
    %2250 = vmatprep.mubr.bf16.mxu0 %v1171
    %2251 = vmatmul.mubr.bf16.gmra.mrb[0].mxu0 %v1170
    %v2252 = vpop.f32.mrb[0].mxu0
    %v2253 = vadd.f32 %v1291, %v2252
    %v2254 = vpop.f32.mrb[0].mxu0
    %v2255 = vadd.f32 %v1295, %v2254
    %v2256 = vpop.f32.mrb[0].mxu0
    %v2257 = vadd.f32 %v1291, %v2256
    %v2258 = vpop.f32.mrb[0].mxu0
    %v2259 = vadd.f32 %v1295, %v2258
    %2260 = vmatprep.mubr.bf16.mxu0 %v1173
    %2261 = vmatmul.mubr.bf16.gmra.mrb[0].mxu0 %v1172
    %v2262 = vpop.f32.mrb[0].mxu0
    %v2263 = vadd.f32 %v1291, %v2262
    %v2264 = vpop.f32.mrb[0].mxu0
    %v2265 = vadd.f32 %v1295, %v2264
    %v2266 = vpop.f32.mrb[0].mxu0
    %v2267 = vadd.f32 %v1291, %v2266
    %v2268 = vpop.f32.mrb[0].mxu0
    %v2269 = vadd.f32 %v1295, %v2268
    %2270 = vdwg.mxu0
    %2271 = vst [vmem:[#allocation8] sm:$0xff] %v1817
    %2272 = vst [vmem:[#allocation8 + $0x8] sm:$0xff] %v1819
    %2273 = vst [vmem:[#allocation8 + $0x10] sm:$0xff] %v1980
    %2274 = vst [vmem:[#allocation8 + $0x18] sm:$0xff] %v1982
    %2275 = vst [vmem:[#allocation8 + $0x20] sm:$0xff] %v2143
    %2276 = vst [vmem:[#allocation8 + $0x28] sm:$0xff] %v2145
    %2277 = vst [vmem:[#allocation8 + $0x30] sm:$0xff] %v1821
    %2278 = vst [vmem:[#allocation8 + $0x38] sm:$0xff] %v1823
    %2279 = vst [vmem:[#allocation8 + $0x40] sm:$0xff] %v1984
    %2280 = vst [vmem:[#allocation8 + $0x48] sm:$0xff] %v1986
    %2281 = vst [vmem:[#allocation8 + $0x50] sm:$0xff] %v2147
    %2282 = vst [vmem:[#allocation8 + $0x58] sm:$0xff] %v2149
    %2283 = vst [vmem:[#allocation8 + $0x60] sm:$0xff] %v1827
    %2284 = vst [vmem:[#allocation8 + $0x68] sm:$0xff] %v1829
    %2285 = vst [vmem:[#allocation8 + $0x70] sm:$0xff] %v1990
    %2286 = vst [vmem:[#allocation8 + $0x78] sm:$0xff] %v1992
    %2287 = vst [vmem:[#allocation8 + $0x80] sm:$0xff] %v2153
    %2288 = vst [vmem:[#allocation8 + $0x88] sm:$0xff] %v2155
    %2289 = vst [vmem:[#allocation8 + $0x90] sm:$0xff] %v1831
    %2290 = vst [vmem:[#allocation8 + $0x98] sm:$0xff] %v1833
    %2291 = vst [vmem:[#allocation8 + $0xa0] sm:$0xff] %v1994
    %2292 = vst [vmem:[#allocation8 + $0xa8] sm:$0xff] %v1996
    %2293 = vst [vmem:[#allocation8 + $0xb0] sm:$0xff] %v2157
    %2294 = vst [vmem:[#allocation8 + $0xb8] sm:$0xff] %v2159
    %2295 = vst [vmem:[#allocation8 + $0xc0] sm:$0xff] %v1837
    %2296 = vst [vmem:[#allocation8 + $0xc8] sm:$0xff] %v1839
    %2297 = vst [vmem:[#allocation8 + $0xd0] sm:$0xff] %v2000
    %2298 = vst [vmem:[#allocation8 + $0xd8] sm:$0xff] %v2002
    %2299 = vst [vmem:[#allocation8 + $0xe0] sm:$0xff] %v2163
    %2300 = vst [vmem:[#allocation8 + $0xe8] sm:$0xff] %v2165
    %2301 = vst [vmem:[#allocation8 + $0xf0] sm:$0xff] %v1841
    %2302 = vst [vmem:[#allocation8 + $0xf8] sm:$0xff] %v1843
    %2303 = vst [vmem:[#allocation8 + $0x100] sm:$0xff] %v2004
    %2304 = vst [vmem:[#allocation8 + $0x108] sm:$0xff] %v2006
    %2305 = vst [vmem:[#allocation8 + $0x110] sm:$0xff] %v2167
    %2306 = vst [vmem:[#allocation8 + $0x118] sm:$0xff] %v2169
    %2307 = vst [vmem:[#allocation8 + $0x120] sm:$0xff] %v1847
    %2308 = vst [vmem:[#allocation8 + $0x128] sm:$0xff] %v1849
    %2309 = vst [vmem:[#allocation8 + $0x130] sm:$0xff] %v2010
    %2310 = vst [vmem:[#allocation8 + $0x138] sm:$0xff] %v2012
    %2311 = vst [vmem:[#allocation8 + $0x140] sm:$0xff] %v2173
    %2312 = vst [vmem:[#allocation8 + $0x148] sm:$0xff] %v2175
    %2313 = vst [vmem:[#allocation8 + $0x150] sm:$0xff] %v1851
    %2314 = vst [vmem:[#allocation8 + $0x158] sm:$0xff] %v1853
    %2315 = vst [vmem:[#allocation8 + $0x160] sm:$0xff] %v2014
    %2316 = vst [vmem:[#allocation8 + $0x168] sm:$0xff] %v2016
    %2317 = vst [vmem:[#allocation8 + $0x170] sm:$0xff] %v2177
    %2318 = vst [vmem:[#allocation8 + $0x178] sm:$0xff] %v2179
    %2319 = vst [vmem:[#allocation8 + $0x180] sm:$0xff] %v1857
    %2320 = vst [vmem:[#allocation8 + $0x188] sm:$0xff] %v1859
    %2321 = vst [vmem:[#allocation8 + $0x190] sm:$0xff] %v2020
    %2322 = vst [vmem:[#allocation8 + $0x198] sm:$0xff] %v2022
    %2323 = vst [vmem:[#allocation8 + $0x1a0] sm:$0xff] %v2183
    %2324 = vst [vmem:[#allocation8 + $0x1a8] sm:$0xff] %v2185
    %2325 = vst [vmem:[#allocation8 + $0x1b0] sm:$0xff] %v1861
    %2326 = vst [vmem:[#allocation8 + $0x1b8] sm:$0xff] %v1863
    %2327 = vst [vmem:[#allocation8 + $0x1c0] sm:$0xff] %v2024
    %2328 = vst [vmem:[#allocation8 + $0x1c8] sm:$0xff] %v2026
    %2329 = vst [vmem:[#allocation8 + $0x1d0] sm:$0xff] %v2187
    %2330 = vst [vmem:[#allocation8 + $0x1d8] sm:$0xff] %v2189
    %2331 = vst [vmem:[#allocation8 + $0x1e0] sm:$0xff] %v1867
    %2332 = vst [vmem:[#allocation8 + $0x1e8] sm:$0xff] %v1869
    %2333 = vst [vmem:[#allocation8 + $0x1f0] sm:$0xff] %v2030
    %2334 = vst [vmem:[#allocation8 + $0x1f8] sm:$0xff] %v2032
    %2335 = vst [vmem:[#allocation8 + $0x200] sm:$0xff] %v2193
    %2336 = vst [vmem:[#allocation8 + $0x208] sm:$0xff] %v2195
    %2337 = vst [vmem:[#allocation8 + $0x210] sm:$0xff] %v1871
    %2338 = vst [vmem:[#allocation8 + $0x218] sm:$0xff] %v1873
    %2339 = vst [vmem:[#allocation8 + $0x220] sm:$0xff] %v2034
    %2340 = vst [vmem:[#allocation8 + $0x228] sm:$0xff] %v2036
    %2341 = vst [vmem:[#allocation8 + $0x230] sm:$0xff] %v2197
    %2342 = vst [vmem:[#allocation8 + $0x238] sm:$0xff] %v2199
    %2343 = vst [vmem:[#allocation8 + $0x240] sm:$0xff] %v1877
    %2344 = vst [vmem:[#allocation8 + $0x248] sm:$0xff] %v1879
    %2345 = vst [vmem:[#allocation8 + $0x250] sm:$0xff] %v2040
    %2346 = vst [vmem:[#allocation8 + $0x258] sm:$0xff] %v2042
    %2347 = vst [vmem:[#allocation8 + $0x260] sm:$0xff] %v2203
    %2348 = vst [vmem:[#allocation8 + $0x268] sm:$0xff] %v2205
    %2349 = vst [vmem:[#allocation8 + $0x270] sm:$0xff] %v1881
    %2350 = vst [vmem:[#allocation8 + $0x278] sm:$0xff] %v1883
    %2351 = vst [vmem:[#allocation8 + $0x280] sm:$0xff] %v2044
    %2352 = vst [vmem:[#allocation8 + $0x288] sm:$0xff] %v2046
    %2353 = vst [vmem:[#allocation8 + $0x290] sm:$0xff] %v2207
    %2354 = vst [vmem:[#allocation8 + $0x298] sm:$0xff] %v2209
    %2355 = vst [vmem:[#allocation8 + $0x2a0] sm:$0xff] %v1887
    %2356 = vst [vmem:[#allocation8 + $0x2a8] sm:$0xff] %v1889
    %2357 = vst [vmem:[#allocation8 + $0x2b0] sm:$0xff] %v2050
    %2358 = vst [vmem:[#allocation8 + $0x2b8] sm:$0xff] %v2052
    %2359 = vst [vmem:[#allocation8 + $0x2c0] sm:$0xff] %v2213
    %2360 = vst [vmem:[#allocation8 + $0x2c8] sm:$0xff] %v2215
    %2361 = vst [vmem:[#allocation8 + $0x2d0] sm:$0xff] %v1891
    %2362 = vst [vmem:[#allocation8 + $0x2d8] sm:$0xff] %v1893
    %2363 = vst [vmem:[#allocation8 + $0x2e0] sm:$0xff] %v2054
    %2364 = vst [vmem:[#allocation8 + $0x2e8] sm:$0xff] %v2056
    %2365 = vst [vmem:[#allocation8 + $0x2f0] sm:$0xff] %v2217
    %2366 = vst [vmem:[#allocation8 + $0x2f8] sm:$0xff] %v2219
    %2367 = vst [vmem:[#allocation8 + $0x300] sm:$0xff] %v1897
    %2368 = vst [vmem:[#allocation8 + $0x308] sm:$0xff] %v1899
    %2369 = vst [vmem:[#allocation8 + $0x310] sm:$0xff] %v2060
    %2370 = vst [vmem:[#allocation8 + $0x318] sm:$0xff] %v2062
    %2371 = vst [vmem:[#allocation8 + $0x320] sm:$0xff] %v2223
    %2372 = vst [vmem:[#allocation8 + $0x328] sm:$0xff] %v2225
    %2373 = vst [vmem:[#allocation8 + $0x330] sm:$0xff] %v1901
    %2374 = vst [vmem:[#allocation8 + $0x338] sm:$0xff] %v1903
    %2375 = vst [vmem:[#allocation8 + $0x340] sm:$0xff] %v2064
    %2376 = vst [vmem:[#allocation8 + $0x348] sm:$0xff] %v2066
    %2377 = vst [vmem:[#allocation8 + $0x350] sm:$0xff] %v2227
    %2378 = vst [vmem:[#allocation8 + $0x358] sm:$0xff] %v2229
    %2379 = vst [vmem:[#allocation8 + $0x360] sm:$0xff] %v1907
    %2380 = vst [vmem:[#allocation8 + $0x368] sm:$0xff] %v1909
    %2381 = vst [vmem:[#allocation8 + $0x370] sm:$0xff] %v2070
    %2382 = vst [vmem:[#allocation8 + $0x378] sm:$0xff] %v2072
    %2383 = vst [vmem:[#allocation8 + $0x380] sm:$0xff] %v2233
    %2384 = vst [vmem:[#allocation8 + $0x388] sm:$0xff] %v2235
    %2385 = vst [vmem:[#allocation8 + $0x390] sm:$0xff] %v1911
    %2386 = vst [vmem:[#allocation8 + $0x398] sm:$0xff] %v1913
    %2387 = vst [vmem:[#allocation8 + $0x3a0] sm:$0xff] %v2074
    %2388 = vst [vmem:[#allocation8 + $0x3a8] sm:$0xff] %v2076
    %2389 = vst [vmem:[#allocation8 + $0x3b0] sm:$0xff] %v2237
    %2390 = vst [vmem:[#allocation8 + $0x3b8] sm:$0xff] %v2239
    %2391 = vst [vmem:[#allocation8 + $0x3c0] sm:$0xff] %v1917
    %2392 = vst [vmem:[#allocation8 + $0x3c8] sm:$0xff] %v1919
    %2393 = vst [vmem:[#allocation8 + $0x3d0] sm:$0xff] %v2080
    %2394 = vst [vmem:[#allocation8 + $0x3d8] sm:$0xff] %v2082
    %2395 = vst [vmem:[#allocation8 + $0x3e0] sm:$0xff] %v2243
    %2396 = vst [vmem:[#allocation8 + $0x3e8] sm:$0xff] %v2245
    %2397 = vst [vmem:[#allocation8 + $0x3f0] sm:$0xff] %v1921
    %2398 = vst [vmem:[#allocation8 + $0x3f8] sm:$0xff] %v1923
    %2399 = vst [vmem:[#allocation8 + $0x400] sm:$0xff] %v2084
    %2400 = vst [vmem:[#allocation8 + $0x408] sm:$0xff] %v2086
    %2401 = vst [vmem:[#allocation8 + $0x410] sm:$0xff] %v2247
    %2402 = vst [vmem:[#allocation8 + $0x418] sm:$0xff] %v2249
    %2403 = vst [vmem:[#allocation8 + $0x420] sm:$0xff] %v1927
    %2404 = vst [vmem:[#allocation8 + $0x428] sm:$0xff] %v1929
    %2405 = vst [vmem:[#allocation8 + $0x430] sm:$0xff] %v2090
    %2406 = vst [vmem:[#allocation8 + $0x438] sm:$0xff] %v2092
    %2407 = vst [vmem:[#allocation8 + $0x440] sm:$0xff] %v2253
    %2408 = vst [vmem:[#allocation8 + $0x448] sm:$0xff] %v2255
    %2409 = vst [vmem:[#allocation8 + $0x450] sm:$0xff] %v1931
    %2410 = vst [vmem:[#allocation8 + $0x458] sm:$0xff] %v1933
    %2411 = vst [vmem:[#allocation8 + $0x460] sm:$0xff] %v2094
    %2412 = vst [vmem:[#allocation8 + $0x468] sm:$0xff] %v2096
    %2413 = vst [vmem:[#allocation8 + $0x470] sm:$0xff] %v2257
    %2414 = vst [vmem:[#allocation8 + $0x478] sm:$0xff] %v2259
    %2415 = vst [vmem:[#allocation8 + $0x480] sm:$0xff] %v1937
    %2416 = vst [vmem:[#allocation8 + $0x488] sm:$0xff] %v1939
    %2417 = vst [vmem:[#allocation8 + $0x490] sm:$0xff] %v2100
    %2418 = vst [vmem:[#allocation8 + $0x498] sm:$0xff] %v2102
    %2419 = vst [vmem:[#allocation8 + $0x4a0] sm:$0xff] %v2263
    %2420 = vst [vmem:[#allocation8 + $0x4a8] sm:$0xff] %v2265
    %2421 = vst [vmem:[#allocation8 + $0x4b0] sm:$0xff] %v1941
    %2422 = vst [vmem:[#allocation8 + $0x4b8] sm:$0xff] %v1943
    %2423 = vst [vmem:[#allocation8 + $0x4c0] sm:$0xff] %v2104
    %2424 = vst [vmem:[#allocation8 + $0x4c8] sm:$0xff] %v2106
    %2425 = vst [vmem:[#allocation8 + $0x4d0] sm:$0xff] %v2267
    %2426 = vst [vmem:[#allocation8 + $0x4d8] sm:$0xff] %v2269
    // Predicated region
    $region34: #{tpu_custom_call.1} parent=1 // pred_check
      _
    $region35: #{tpu_custom_call.1} parent=1 // pred_check_branch
      %2428 = sbr.rel (0) target = $region37
    $region36: #{tpu_custom_call.1} parent=1 // pred_region
      %s2430 = ssub.s32 19968, 19968
      %2431 = vsyncadd [#allocation4], %s2430
      %s2432 = sshll.u32 [#allocation8], 4
      %s2433 = int_to_ptr.vmem [resolvable:$true] %s2432
      %2438 = dma.vmem_to_hbm [thread:$0]  %s2433, 19968, %s5, [#allocation4], 768, 768, 48
    $region37: #{tpu_custom_call.1} parent=1 // pred_fallthru
      _
    // Predicated region
    $region38: #{tpu_custom_call.1} parent=1 // pred_check
      _
    $region39: #{tpu_custom_call.1} parent=1 // pred_check_branch
      %2440 = sbr.rel (0) target = $region41
    $region40: #{tpu_custom_call.1} parent=1 // pred_region
      %2441 = dma.done [#allocation4], 19968
    $region41: #{tpu_custom_call.1} parent=1 // pred_fallthru
      _
    %2442 = vsyncpa [#allocation3], 1
    %2443 = vsyncpa [#allocation6], 1
    %2444 = vsyncpa [#allocation4], 1

</llo_original>
